<compile_context>
chip_gen: v7x
topology: tpu7x:2x2x1
jax: 0.10.0
libtpu: 0.0.40
codegen_flags: <defaults>
</compile_context>

<pallas_src>
import functools

import jax
import jax.numpy as jnp
from jax import lax
from jax.experimental import pallas as pl
from jax.experimental.pallas import tpu as pltpu


def _attention_kernel(x_ref, wqkv_ref, wout_ref, bout_ref, o_ref, acc_ref, *,
                      heads, dim_head, scale):
    # x_ref block: (1, n, dim); weights/bias are full arrays resident in VMEM.
    x = x_ref[0]                                   # (n, dim)
    inner = heads * dim_head
    cdt = x.dtype                                  # MXU operand dtype (f32 / bf16)

    # QKV projection (MXU): (n, dim) @ (dim, 3*inner) -> (n, 3*inner), f32 acc.
    qkv = jnp.dot(x, wqkv_ref[...], preferred_element_type=jnp.float32)

    # Fold the softmax scale into q once (cheaper than scaling each (n, n)
    # score matrix per head). scale = dim**-0.5, matching the PyTorch module
    # (which uses `dim`, not dim_head).
    q = (qkv[:, 0 * inner:1 * inner] * scale).astype(cdt)   # (n, inner)
    k = qkv[:, 1 * inner:2 * inner].astype(cdt)
    v = qkv[:, 2 * inner:3 * inner].astype(cdt)

    # Per-head attention. rearrange 'b n (h d) -> b h n d' == static column
    # slicing; each head's output is written directly into the scratch
    # accumulator (== 'b h n d -> b n (h d)' concat), bounding live ranges.
    for hh in range(heads):
        sl = slice(hh * dim_head, (hh + 1) * dim_head)
        qh = q[:, sl]                              # (n, d)
        kh = k[:, sl]
        vh = v[:, sl]

        # dots[i, j] = sum_d q[i, d] * k[j, d]; contracting the last dims feeds
        # the MXU directly -- no explicit transpose / relayout of kh.
        dots = lax.dot_general(qh, kh, (((1,), (1,)), ((), ())),
                               preferred_element_type=jnp.float32)   # (n, n)

        # TODO(synk): optional boolean `mask` path (masked_fill with
        # -finfo.max) is not implemented; the module is exercised with
        # mask=None.

        # Softmax over the last axis, kept in f32 (v5e has no bf16 VPU/EUP).
        m = jnp.max(dots, axis=-1, keepdims=True)
        e = jnp.exp(dots - m)
        attn = e * pl.reciprocal(jnp.sum(e, axis=-1, keepdims=True), approx=True)

        # out_h = attn @ v_h, f32 accumulation, written into the head's slot.
        acc_ref[:, sl] = jnp.dot(attn.astype(cdt), vh,
                                 preferred_element_type=jnp.float32)

    # Output projection (+bias): (n, inner) @ (inner, dim) -> (n, dim).
    # Dropout(0.0) == identity.
    out = jnp.dot(acc_ref[...].astype(cdt), wout_ref[...],
                  preferred_element_type=jnp.float32)
    out = out + bout_ref[...].astype(jnp.float32)            # (1, dim) broadcast
    o_ref[0] = out.astype(o_ref.dtype)


def attention_forward(x, w_qkv, w_out, b_out, *, heads, dim_head):
    b, n, dim = x.shape
    inner = heads * dim_head
    assert w_qkv.shape == (dim, 3 * inner)
    assert w_out.shape == (inner, dim)
    assert b_out.shape == (dim,)
    scale = dim ** (-0.5)
    b_out2d = b_out.reshape(1, dim)

    kernel = functools.partial(
        _attention_kernel, heads=heads, dim_head=dim_head, scale=scale)

    # Explicit VMEM budget: x/out blocks (double-buffered) + resident weights
    # + f32 intermediates, with 2x headroom, clamped to [16 MiB, 64 MiB]
    # (64 MiB == v7x physical per-TC VMEM).
    itemsize = jnp.dtype(x.dtype).itemsize
    est = (
        2 * 2 * n * dim * itemsize                             # x + out blocks
        + (dim * 3 * inner + inner * dim + dim) * itemsize     # weights + bias
        + (n * 3 * inner + n * inner + 2 * n * n) * 4          # qkv/acc/scores
    )
    vmem_limit = int(min(max(2 * est, 16 * 1024 * 1024), 64 * 1024 * 1024))

    # TODO(synk): for long sequences (n >~ 512) add a q-tile grid axis and a
    # flash-style online softmax over KV tiles instead of the full (n, n).
    def build(single_buffer_weights):
        # Grid-invariant weights don't need double-buffering; Buffered(1)
        # halves their VMEM footprint (matters at real ViT dims / v7x).
        wkw = ({"pipeline_mode": pl.Buffered(1)} if single_buffer_weights else {})
        return pl.pallas_call(
            kernel,
            out_shape=jax.ShapeDtypeStruct((b, n, dim), x.dtype),
            grid=(b,),
            in_specs=[
                pl.BlockSpec((1, n, dim), lambda i: (i, 0, 0)),
                pl.BlockSpec((dim, 3 * inner), lambda i: (0, 0), **wkw),
                pl.BlockSpec((inner, dim), lambda i: (0, 0), **wkw),
                pl.BlockSpec((1, dim), lambda i: (0, 0), **wkw),
            ],
            out_specs=pl.BlockSpec((1, n, dim), lambda i: (i, 0, 0)),
            scratch_shapes=[pltpu.VMEM((n, inner), jnp.float32)],
            compiler_params=pltpu.CompilerParams(
                dimension_semantics=("parallel",),
                vmem_limit_bytes=vmem_limit,
            ),
        )

    try:
        return build(True)(x, w_qkv, w_out, b_out2d)
    except Exception:
        # Fallback if pipeline_mode=pl.Buffered(1) is rejected by the installed
        # jax/libtpu: keep default double-buffering of the weights.
        return build(False)(x, w_qkv, w_out, b_out2d)


def attention_reference(x, w_qkv, w_out, b_out, *, heads, dim_head):
    """Pure-JAX reference mirroring the PyTorch forward (mask=None)."""
    b, n, dim = x.shape
    inner = heads * dim_head
    scale = dim ** (-0.5)
    qkv = x @ w_qkv                                          # (b, n, 3*inner)
    q, k, v = jnp.split(qkv, 3, axis=-1)

    def split_heads(t):                                      # 'b n (h d) -> b h n d'
        return t.reshape(b, n, heads, dim_head).transpose(0, 2, 1, 3)

    q, k, v = map(split_heads, (q, k, v))
    dots = jnp.einsum('bhid,bhjd->bhij', q, k) * scale
    attn = jax.nn.softmax(dots, axis=-1)
    out = jnp.einsum('bhij,bhjd->bhid', attn, v)
    out = out.transpose(0, 2, 1, 3).reshape(b, n, inner)     # 'b h n d -> b n (h d)'
    return out @ w_out + b_out


if __name__ == "__main__":
    # Small shapes consistent with the module.
    batch, seq, dim = 2, 8, 32
    heads, dim_head = 4, 16
    inner = heads * dim_head

    key = jax.random.PRNGKey(0)
    kx, kq, ko, kb = jax.random.split(key, 4)
    x = jax.random.normal(kx, (batch, seq, dim), dtype=jnp.float32)
    w_qkv = jax.random.normal(kq, (dim, 3 * inner), dtype=jnp.float32) * 0.02
    w_out = jax.random.normal(ko, (inner, dim), dtype=jnp.float32) * 0.02
    b_out = jax.random.normal(kb, (dim,), dtype=jnp.float32) * 0.02

    # float32 path
    out = attention_forward(x, w_qkv, w_out, b_out, heads=heads, dim_head=dim_head)
    out = jax.block_until_ready(out)
    ref = attention_reference(x, w_qkv, w_out, b_out, heads=heads, dim_head=dim_head)
    assert out.shape == (batch, seq, dim)
    assert jnp.allclose(out, ref, atol=2e-3, rtol=2e-3), "f32 mismatch vs reference"

    # bfloat16 path (halves DMA bytes, uses the MXU bf16 path on v6e/v7x).
    xb, wqb, wob, bob = (t.astype(jnp.bfloat16) for t in (x, w_qkv, w_out, b_out))
    out_bf = attention_forward(xb, wqb, wob, bob, heads=heads, dim_head=dim_head)
    out_bf = jax.block_until_ready(out_bf)
    ref_bf = attention_reference(
        *(t.astype(jnp.float32) for t in (xb, wqb, wob, bob)),
        heads=heads, dim_head=dim_head)
    assert jnp.allclose(out_bf.astype(jnp.float32), ref_bf, atol=2e-2, rtol=2e-2), \
        "bf16 mismatch vs reference"

    print("KERNEL_OK")
</pallas_src>

<mosaic_0001>
module attributes {stable_mosaic.version = 11 : i64} {
  func.func @_attention_kernel(%arg0: i32, %arg1: memref<1x8x32xf32, #tpu.memory_space<vmem>>, %arg2: memref<32x192xf32, #tpu.memory_space<vmem>>, %arg3: memref<64x32xf32, #tpu.memory_space<vmem>>, %arg4: memref<1x32xf32, #tpu.memory_space<vmem>>, %arg5: memref<1x8x32xf32, #tpu.memory_space<vmem>>, %arg6: memref<8x64xf32, #tpu.memory_space<vmem>>) attributes {dimension_semantics = [#tpu.dimension_semantics<parallel>], iteration_bounds = array<i64: 2>, scalar_prefetch = 0 : i64, scratch_operands = 1 : i64, tpu.core_type = #tpu.core_type<tc>, window_params = [{transform_indices = @transform_0, window_bounds = array<i64: 1, 8, 32>}, {pipeline_mode = #tpu.pipeline_mode<synchronous>, transform_indices = @transform_1, window_bounds = array<i64: 32, 192>}, {pipeline_mode = #tpu.pipeline_mode<synchronous>, transform_indices = @transform_2, window_bounds = array<i64: 64, 32>}, {pipeline_mode = #tpu.pipeline_mode<synchronous>, transform_indices = @transform_3, window_bounds = array<i64: 1, 32>}, {transform_indices = @transform_4, window_bounds = array<i64: 1, 8, 32>}]} {
    %c0 = arith.constant 0 : index
    %c0_0 = arith.constant 0 : index
    %c0_1 = arith.constant 0 : index
    %0 = vector.load %arg1[%c0, %c0_0, %c0_1] : memref<1x8x32xf32, #tpu.memory_space<vmem>>, vector<1x8x32xf32>
    %1 = vector.shape_cast %0 : vector<1x8x32xf32> to vector<8x32xf32>
    %c0_2 = arith.constant 0 : index
    %c0_3 = arith.constant 0 : index
    %2 = vector.load %arg2[%c0_2, %c0_3] : memref<32x192xf32, #tpu.memory_space<vmem>>, vector<32x192xf32>
    %cst = arith.constant dense<0.000000e+00> : vector<8x192xf32>
    %3 = tpu.matmul %1, %2, %cst {dimension_numbers = #tpu.dot_dimension_numbers<[1], [0], [0], [1], [0, 0, 1, 1], [], []>} : vector<8x32xf32>, vector<32x192xf32>, vector<8x192xf32> -> vector<8x192xf32>
    %4 = vector.extract_strided_slice %3 {offsets = [0, 0], sizes = [8, 64], strides = [1, 1]} : vector<8x192xf32> to vector<8x64xf32>
    %cst_4 = arith.constant 0.176776692 : f32
    %5 = vector.broadcast %cst_4 : f32 to vector<8x64xf32>
    %6 = arith.mulf %4, %5 : vector<8x64xf32>
    %7 = vector.extract_strided_slice %3 {offsets = [0, 64], sizes = [8, 64], strides = [1, 1]} : vector<8x192xf32> to vector<8x64xf32>
    %8 = vector.extract_strided_slice %3 {offsets = [0, 128], sizes = [8, 64], strides = [1, 1]} : vector<8x192xf32> to vector<8x64xf32>
    %9 = vector.extract_strided_slice %6 {offsets = [0, 0], sizes = [8, 16], strides = [1, 1]} : vector<8x64xf32> to vector<8x16xf32>
    %10 = vector.extract_strided_slice %7 {offsets = [0, 0], sizes = [8, 16], strides = [1, 1]} : vector<8x64xf32> to vector<8x16xf32>
    %11 = vector.extract_strided_slice %8 {offsets = [0, 0], sizes = [8, 16], strides = [1, 1]} : vector<8x64xf32> to vector<8x16xf32>
    %cst_5 = arith.constant dense<0.000000e+00> : vector<8x8xf32>
    %12 = tpu.matmul %9, %10, %cst_5 {dimension_numbers = #tpu.dot_dimension_numbers<[1], [1], [0], [0], [0, 0, 1, 0], [], []>} : vector<8x16xf32>, vector<8x16xf32>, vector<8x8xf32> -> vector<8x8xf32>
    %cst_6 = arith.constant dense<0xFF800000> : vector<8xf32>
    %13 = vector.multi_reduction <maximumf>, %12, %cst_6 [1] : vector<8x8xf32> to vector<8xf32>
    %14 = vector.shape_cast %13 : vector<8xf32> to vector<8x1xf32>
    %15 = vector.broadcast %14 : vector<8x1xf32> to vector<8x8xf32>
    %16 = arith.subf %12, %15 : vector<8x8xf32>
    %17 = math.exp %16 : vector<8x8xf32>
    %cst_7 = arith.constant dense<0.000000e+00> : vector<8xf32>
    %18 = vector.multi_reduction <add>, %17, %cst_7 [1] : vector<8x8xf32> to vector<8xf32>
    %19 = vector.shape_cast %18 : vector<8xf32> to vector<8x1xf32>
    %20 = tpu.reciprocal %19 {approx = true} : vector<8x1xf32> -> vector<8x1xf32>
    %21 = vector.broadcast %20 : vector<8x1xf32> to vector<8x8xf32>
    %22 = arith.mulf %17, %21 : vector<8x8xf32>
    %cst_8 = arith.constant dense<0.000000e+00> : vector<8x16xf32>
    %23 = tpu.matmul %22, %11, %cst_8 {dimension_numbers = #tpu.dot_dimension_numbers<[1], [0], [0], [1], [0, 0, 1, 1], [], []>} : vector<8x8xf32>, vector<8x16xf32>, vector<8x16xf32> -> vector<8x16xf32>
    %c0_9 = arith.constant 0 : index
    %c0_10 = arith.constant 0 : index
    %24 = vector.load %arg6[%c0_9, %c0_10] : memref<8x64xf32, #tpu.memory_space<vmem>>, vector<8x16xf32>
    tpu.vector_store %arg6[%c0_9, %c0_10], %23 {strides = array<i32>} : memref<8x64xf32, #tpu.memory_space<vmem>>, vector<8x16xf32>,
    %25 = vector.extract_strided_slice %6 {offsets = [0, 16], sizes = [8, 16], strides = [1, 1]} : vector<8x64xf32> to vector<8x16xf32>
    %26 = vector.extract_strided_slice %7 {offsets = [0, 16], sizes = [8, 16], strides = [1, 1]} : vector<8x64xf32> to vector<8x16xf32>
    %27 = vector.extract_strided_slice %8 {offsets = [0, 16], sizes = [8, 16], strides = [1, 1]} : vector<8x64xf32> to vector<8x16xf32>
    %cst_11 = arith.constant dense<0.000000e+00> : vector<8x8xf32>
    %28 = tpu.matmul %25, %26, %cst_11 {dimension_numbers = #tpu.dot_dimension_numbers<[1], [1], [0], [0], [0, 0, 1, 0], [], []>} : vector<8x16xf32>, vector<8x16xf32>, vector<8x8xf32> -> vector<8x8xf32>
    %cst_12 = arith.constant dense<0xFF800000> : vector<8xf32>
    %29 = vector.multi_reduction <maximumf>, %28, %cst_12 [1] : vector<8x8xf32> to vector<8xf32>
    %30 = vector.shape_cast %29 : vector<8xf32> to vector<8x1xf32>
    %31 = vector.broadcast %30 : vector<8x1xf32> to vector<8x8xf32>
    %32 = arith.subf %28, %31 : vector<8x8xf32>
    %33 = math.exp %32 : vector<8x8xf32>
    %cst_13 = arith.constant dense<0.000000e+00> : vector<8xf32>
    %34 = vector.multi_reduction <add>, %33, %cst_13 [1] : vector<8x8xf32> to vector<8xf32>
    %35 = vector.shape_cast %34 : vector<8xf32> to vector<8x1xf32>
    %36 = tpu.reciprocal %35 {approx = true} : vector<8x1xf32> -> vector<8x1xf32>
    %37 = vector.broadcast %36 : vector<8x1xf32> to vector<8x8xf32>
    %38 = arith.mulf %33, %37 : vector<8x8xf32>
    %cst_14 = arith.constant dense<0.000000e+00> : vector<8x16xf32>
    %39 = tpu.matmul %38, %27, %cst_14 {dimension_numbers = #tpu.dot_dimension_numbers<[1], [0], [0], [1], [0, 0, 1, 1], [], []>} : vector<8x8xf32>, vector<8x16xf32>, vector<8x16xf32> -> vector<8x16xf32>
    %c0_15 = arith.constant 0 : index
    %c16 = arith.constant 16 : index
    %40 = vector.load %arg6[%c0_15, %c16] : memref<8x64xf32, #tpu.memory_space<vmem>>, vector<8x16xf32>
    tpu.vector_store %arg6[%c0_15, %c16], %39 {strides = array<i32>} : memref<8x64xf32, #tpu.memory_space<vmem>>, vector<8x16xf32>,
    %41 = vector.extract_strided_slice %6 {offsets = [0, 32], sizes = [8, 16], strides = [1, 1]} : vector<8x64xf32> to vector<8x16xf32>
    %42 = vector.extract_strided_slice %7 {offsets = [0, 32], sizes = [8, 16], strides = [1, 1]} : vector<8x64xf32> to vector<8x16xf32>
    %43 = vector.extract_strided_slice %8 {offsets = [0, 32], sizes = [8, 16], strides = [1, 1]} : vector<8x64xf32> to vector<8x16xf32>
    %cst_16 = arith.constant dense<0.000000e+00> : vector<8x8xf32>
    %44 = tpu.matmul %41, %42, %cst_16 {dimension_numbers = #tpu.dot_dimension_numbers<[1], [1], [0], [0], [0, 0, 1, 0], [], []>} : vector<8x16xf32>, vector<8x16xf32>, vector<8x8xf32> -> vector<8x8xf32>
    %cst_17 = arith.constant dense<0xFF800000> : vector<8xf32>
    %45 = vector.multi_reduction <maximumf>, %44, %cst_17 [1] : vector<8x8xf32> to vector<8xf32>
    %46 = vector.shape_cast %45 : vector<8xf32> to vector<8x1xf32>
    %47 = vector.broadcast %46 : vector<8x1xf32> to vector<8x8xf32>
    %48 = arith.subf %44, %47 : vector<8x8xf32>
    %49 = math.exp %48 : vector<8x8xf32>
    %cst_18 = arith.constant dense<0.000000e+00> : vector<8xf32>
    %50 = vector.multi_reduction <add>, %49, %cst_18 [1] : vector<8x8xf32> to vector<8xf32>
    %51 = vector.shape_cast %50 : vector<8xf32> to vector<8x1xf32>
    %52 = tpu.reciprocal %51 {approx = true} : vector<8x1xf32> -> vector<8x1xf32>
    %53 = vector.broadcast %52 : vector<8x1xf32> to vector<8x8xf32>
    %54 = arith.mulf %49, %53 : vector<8x8xf32>
    %cst_19 = arith.constant dense<0.000000e+00> : vector<8x16xf32>
    %55 = tpu.matmul %54, %43, %cst_19 {dimension_numbers = #tpu.dot_dimension_numbers<[1], [0], [0], [1], [0, 0, 1, 1], [], []>} : vector<8x8xf32>, vector<8x16xf32>, vector<8x16xf32> -> vector<8x16xf32>
    %c0_20 = arith.constant 0 : index
    %c32 = arith.constant 32 : index
    %56 = vector.load %arg6[%c0_20, %c32] : memref<8x64xf32, #tpu.memory_space<vmem>>, vector<8x16xf32>
    tpu.vector_store %arg6[%c0_20, %c32], %55 {strides = array<i32>} : memref<8x64xf32, #tpu.memory_space<vmem>>, vector<8x16xf32>,
    %57 = vector.extract_strided_slice %6 {offsets = [0, 48], sizes = [8, 16], strides = [1, 1]} : vector<8x64xf32> to vector<8x16xf32>
    %58 = vector.extract_strided_slice %7 {offsets = [0, 48], sizes = [8, 16], strides = [1, 1]} : vector<8x64xf32> to vector<8x16xf32>
    %59 = vector.extract_strided_slice %8 {offsets = [0, 48], sizes = [8, 16], strides = [1, 1]} : vector<8x64xf32> to vector<8x16xf32>
    %cst_21 = arith.constant dense<0.000000e+00> : vector<8x8xf32>
    %60 = tpu.matmul %57, %58, %cst_21 {dimension_numbers = #tpu.dot_dimension_numbers<[1], [1], [0], [0], [0, 0, 1, 0], [], []>} : vector<8x16xf32>, vector<8x16xf32>, vector<8x8xf32> -> vector<8x8xf32>
    %cst_22 = arith.constant dense<0xFF800000> : vector<8xf32>
    %61 = vector.multi_reduction <maximumf>, %60, %cst_22 [1] : vector<8x8xf32> to vector<8xf32>
    %62 = vector.shape_cast %61 : vector<8xf32> to vector<8x1xf32>
    %63 = vector.broadcast %62 : vector<8x1xf32> to vector<8x8xf32>
    %64 = arith.subf %60, %63 : vector<8x8xf32>
    %65 = math.exp %64 : vector<8x8xf32>
    %cst_23 = arith.constant dense<0.000000e+00> : vector<8xf32>
    %66 = vector.multi_reduction <add>, %65, %cst_23 [1] : vector<8x8xf32> to vector<8xf32>
    %67 = vector.shape_cast %66 : vector<8xf32> to vector<8x1xf32>
    %68 = tpu.reciprocal %67 {approx = true} : vector<8x1xf32> -> vector<8x1xf32>
    %69 = vector.broadcast %68 : vector<8x1xf32> to vector<8x8xf32>
    %70 = arith.mulf %65, %69 : vector<8x8xf32>
    %cst_24 = arith.constant dense<0.000000e+00> : vector<8x16xf32>
    %71 = tpu.matmul %70, %59, %cst_24 {dimension_numbers = #tpu.dot_dimension_numbers<[1], [0], [0], [1], [0, 0, 1, 1], [], []>} : vector<8x8xf32>, vector<8x16xf32>, vector<8x16xf32> -> vector<8x16xf32>
    %c0_25 = arith.constant 0 : index
    %c48 = arith.constant 48 : index
    %72 = vector.load %arg6[%c0_25, %c48] : memref<8x64xf32, #tpu.memory_space<vmem>>, vector<8x16xf32>
    tpu.vector_store %arg6[%c0_25, %c48], %71 {strides = array<i32>} : memref<8x64xf32, #tpu.memory_space<vmem>>, vector<8x16xf32>,
    %c0_26 = arith.constant 0 : index
    %c0_27 = arith.constant 0 : index
    %73 = vector.load %arg6[%c0_26, %c0_27] : memref<8x64xf32, #tpu.memory_space<vmem>>, vector<8x64xf32>
    %c0_28 = arith.constant 0 : index
    %c0_29 = arith.constant 0 : index
    %74 = vector.load %arg3[%c0_28, %c0_29] : memref<64x32xf32, #tpu.memory_space<vmem>>, vector<64x32xf32>
    %cst_30 = arith.constant dense<0.000000e+00> : vector<8x32xf32>
    %75 = tpu.matmul %73, %74, %cst_30 {dimension_numbers = #tpu.dot_dimension_numbers<[1], [0], [0], [1], [0, 0, 1, 1], [], []>} : vector<8x64xf32>, vector<64x32xf32>, vector<8x32xf32> -> vector<8x32xf32>
    %c0_31 = arith.constant 0 : index
    %c0_32 = arith.constant 0 : index
    %76 = vector.load %arg4[%c0_31, %c0_32] : memref<1x32xf32, #tpu.memory_space<vmem>>, vector<1x32xf32>
    %77 = vector.broadcast %76 : vector<1x32xf32> to vector<8x32xf32>
    %78 = arith.addf %75, %77 : vector<8x32xf32>
    %c0_33 = arith.constant 0 : index
    %c0_34 = arith.constant 0 : index
    %c0_35 = arith.constant 0 : index
    %79 = vector.load %arg5[%c0_33, %c0_34, %c0_35] : memref<1x8x32xf32, #tpu.memory_space<vmem>>, vector<1x8x32xf32>
    %80 = vector.shape_cast %79 : vector<1x8x32xf32> to vector<8x32xf32>
    %81 = vector.shape_cast %78 : vector<8x32xf32> to vector<1x8x32xf32>
    tpu.vector_store %arg5[%c0_33, %c0_34, %c0_35], %81 {strides = array<i32>} : memref<1x8x32xf32, #tpu.memory_space<vmem>>, vector<1x8x32xf32>,
    return
  }
  func.func @transform_0(%arg0: i32) -> (i32, i32, i32) {
    %c0_i32 = arith.constant 0 : i32
    %c0_i32_0 = arith.constant 0 : i32
    %c0_i32_1 = arith.constant 0 : i32
    return %arg0, %c0_i32, %c0_i32_0 : i32, i32, i32
  }
  func.func @transform_1(%arg0: i32) -> (i32, i32) {
    %c0_i32 = arith.constant 0 : i32
    %c0_i32_0 = arith.constant 0 : i32
    %c0_i32_1 = arith.constant 0 : i32
    return %c0_i32, %c0_i32_0 : i32, i32
  }
  func.func @transform_2(%arg0: i32) -> (i32, i32) {
    %c0_i32 = arith.constant 0 : i32
    %c0_i32_0 = arith.constant 0 : i32
    %c0_i32_1 = arith.constant 0 : i32
    return %c0_i32, %c0_i32_0 : i32, i32
  }
  func.func @transform_3(%arg0: i32) -> (i32, i32) {
    %c0_i32 = arith.constant 0 : i32
    %c0_i32_0 = arith.constant 0 : i32
    %c0_i32_1 = arith.constant 0 : i32
    return %c0_i32, %c0_i32_0 : i32, i32
  }
  func.func @transform_4(%arg0: i32) -> (i32, i32, i32) {
    %c0_i32 = arith.constant 0 : i32
    %c0_i32_0 = arith.constant 0 : i32
    %c0_i32_1 = arith.constant 0 : i32
    return %arg0, %c0_i32, %c0_i32_0 : i32, i32, i32
  }
}

module attributes {stable_mosaic.version = 11 : i64} {
  func.func @_attention_kernel(%arg0: i32, %arg1: memref<1x8x32xf32, #tpu.memory_space<vmem>>, %arg2: memref<32x192xf32, #tpu.memory_space<vmem>>, %arg3: memref<64x32xf32, #tpu.memory_space<vmem>>, %arg4: memref<1x32xf32, #tpu.memory_space<vmem>>, %arg5: memref<1x8x32xf32, #tpu.memory_space<vmem>>, %arg6: memref<8x64xf32, #tpu.memory_space<vmem>>) attributes {dimension_semantics = [#tpu.dimension_semantics<parallel>], iteration_bounds = array<i64: 2>, scalar_prefetch = 0 : i64, scratch_operands = 1 : i64, tpu.core_type = #tpu.core_type<tc>, window_params = [{transform_indices = @transform_0, window_bounds = array<i64: 1, 8, 32>}, {pipeline_mode = #tpu.pipeline_mode<synchronous>, transform_indices = @transform_1, window_bounds = array<i64: 32, 192>}, {pipeline_mode = #tpu.pipeline_mode<synchronous>, transform_indices = @transform_2, window_bounds = array<i64: 64, 32>}, {pipeline_mode = #tpu.pipeline_mode<synchronous>, transform_indices = @transform_3, window_bounds = array<i64: 1, 32>}, {transform_indices = @transform_4, window_bounds = array<i64: 1, 8, 32>}]} {
    %c0 = arith.constant 0 : index
    %c0_0 = arith.constant 0 : index
    %c0_1 = arith.constant 0 : index
    %0 = vector.load %arg1[%c0, %c0_0, %c0_1] : memref<1x8x32xf32, #tpu.memory_space<vmem>>, vector<1x8x32xf32>
    %1 = vector.shape_cast %0 : vector<1x8x32xf32> to vector<8x32xf32>
    %c0_2 = arith.constant 0 : index
    %c0_3 = arith.constant 0 : index
    %2 = vector.load %arg2[%c0_2, %c0_3] : memref<32x192xf32, #tpu.memory_space<vmem>>, vector<32x192xf32>
    %cst = arith.constant dense<0.000000e+00> : vector<8x192xf32>
    %3 = tpu.matmul %1, %2, %cst {dimension_numbers = #tpu.dot_dimension_numbers<[1], [0], [0], [1], [0, 0, 1, 1], [], []>} : vector<8x32xf32>, vector<32x192xf32>, vector<8x192xf32> -> vector<8x192xf32>
    %4 = vector.extract_strided_slice %3 {offsets = [0, 0], sizes = [8, 64], strides = [1, 1]} : vector<8x192xf32> to vector<8x64xf32>
    %cst_4 = arith.constant 0.176776692 : f32
    %5 = vector.broadcast %cst_4 : f32 to vector<8x64xf32>
    %6 = arith.mulf %4, %5 : vector<8x64xf32>
    %7 = vector.extract_strided_slice %3 {offsets = [0, 64], sizes = [8, 64], strides = [1, 1]} : vector<8x192xf32> to vector<8x64xf32>
    %8 = vector.extract_strided_slice %3 {offsets = [0, 128], sizes = [8, 64], strides = [1, 1]} : vector<8x192xf32> to vector<8x64xf32>
    %9 = vector.extract_strided_slice %6 {offsets = [0, 0], sizes = [8, 16], strides = [1, 1]} : vector<8x64xf32> to vector<8x16xf32>
    %10 = vector.extract_strided_slice %7 {offsets = [0, 0], sizes = [8, 16], strides = [1, 1]} : vector<8x64xf32> to vector<8x16xf32>
    %11 = vector.extract_strided_slice %8 {offsets = [0, 0], sizes = [8, 16], strides = [1, 1]} : vector<8x64xf32> to vector<8x16xf32>
    %cst_5 = arith.constant dense<0.000000e+00> : vector<8x8xf32>
    %12 = tpu.matmul %9, %10, %cst_5 {dimension_numbers = #tpu.dot_dimension_numbers<[1], [1], [0], [0], [0, 0, 1, 0], [], []>} : vector<8x16xf32>, vector<8x16xf32>, vector<8x8xf32> -> vector<8x8xf32>
    %cst_6 = arith.constant dense<0xFF800000> : vector<8xf32>
    %13 = vector.multi_reduction <maximumf>, %12, %cst_6 [1] : vector<8x8xf32> to vector<8xf32>
    %14 = vector.shape_cast %13 : vector<8xf32> to vector<8x1xf32>
    %15 = vector.broadcast %14 : vector<8x1xf32> to vector<8x8xf32>
    %16 = arith.subf %12, %15 : vector<8x8xf32>
    %17 = math.exp %16 : vector<8x8xf32>
    %cst_7 = arith.constant dense<0.000000e+00> : vector<8xf32>
    %18 = vector.multi_reduction <add>, %17, %cst_7 [1] : vector<8x8xf32> to vector<8xf32>
    %19 = vector.shape_cast %18 : vector<8xf32> to vector<8x1xf32>
    %20 = tpu.reciprocal %19 {approx = true} : vector<8x1xf32> -> vector<8x1xf32>
    %21 = vector.broadcast %20 : vector<8x1xf32> to vector<8x8xf32>
    %22 = arith.mulf %17, %21 : vector<8x8xf32>
    %cst_8 = arith.constant dense<0.000000e+00> : vector<8x16xf32>
    %23 = tpu.matmul %22, %11, %cst_8 {dimension_numbers = #tpu.dot_dimension_numbers<[1], [0], [0], [1], [0, 0, 1, 1], [], []>} : vector<8x8xf32>, vector<8x16xf32>, vector<8x16xf32> -> vector<8x16xf32>
    %c0_9 = arith.constant 0 : index
    %c0_10 = arith.constant 0 : index
    %24 = vector.load %arg6[%c0_9, %c0_10] : memref<8x64xf32, #tpu.memory_space<vmem>>, vector<8x16xf32>
    tpu.vector_store %arg6[%c0_9, %c0_10], %23 {strides = array<i32>} : memref<8x64xf32, #tpu.memory_space<vmem>>, vector<8x16xf32>,
    %25 = vector.extract_strided_slice %6 {offsets = [0, 16], sizes = [8, 16], strides = [1, 1]} : vector<8x64xf32> to vector<8x16xf32>
    %26 = vector.extract_strided_slice %7 {offsets = [0, 16], sizes = [8, 16], strides = [1, 1]} : vector<8x64xf32> to vector<8x16xf32>
    %27 = vector.extract_strided_slice %8 {offsets = [0, 16], sizes = [8, 16], strides = [1, 1]} : vector<8x64xf32> to vector<8x16xf32>
    %cst_11 = arith.constant dense<0.000000e+00> : vector<8x8xf32>
    %28 = tpu.matmul %25, %26, %cst_11 {dimension_numbers = #tpu.dot_dimension_numbers<[1], [1], [0], [0], [0, 0, 1, 0], [], []>} : vector<8x16xf32>, vector<8x16xf32>, vector<8x8xf32> -> vector<8x8xf32>
    %cst_12 = arith.constant dense<0xFF800000> : vector<8xf32>
    %29 = vector.multi_reduction <maximumf>, %28, %cst_12 [1] : vector<8x8xf32> to vector<8xf32>
    %30 = vector.shape_cast %29 : vector<8xf32> to vector<8x1xf32>
    %31 = vector.broadcast %30 : vector<8x1xf32> to vector<8x8xf32>
    %32 = arith.subf %28, %31 : vector<8x8xf32>
    %33 = math.exp %32 : vector<8x8xf32>
    %cst_13 = arith.constant dense<0.000000e+00> : vector<8xf32>
    %34 = vector.multi_reduction <add>, %33, %cst_13 [1] : vector<8x8xf32> to vector<8xf32>
    %35 = vector.shape_cast %34 : vector<8xf32> to vector<8x1xf32>
    %36 = tpu.reciprocal %35 {approx = true} : vector<8x1xf32> -> vector<8x1xf32>
    %37 = vector.broadcast %36 : vector<8x1xf32> to vector<8x8xf32>
    %38 = arith.mulf %33, %37 : vector<8x8xf32>
    %cst_14 = arith.constant dense<0.000000e+00> : vector<8x16xf32>
    %39 = tpu.matmul %38, %27, %cst_14 {dimension_numbers = #tpu.dot_dimension_numbers<[1], [0], [0], [1], [0, 0, 1, 1], [], []>} : vector<8x8xf32>, vector<8x16xf32>, vector<8x16xf32> -> vector<8x16xf32>
    %c0_15 = arith.constant 0 : index
    %c16 = arith.constant 16 : index
    %40 = vector.load %arg6[%c0_15, %c16] : memref<8x64xf32, #tpu.memory_space<vmem>>, vector<8x16xf32>
    tpu.vector_store %arg6[%c0_15, %c16], %39 {strides = array<i32>} : memref<8x64xf32, #tpu.memory_space<vmem>>, vector<8x16xf32>,
    %41 = vector.extract_strided_slice %6 {offsets = [0, 32], sizes = [8, 16], strides = [1, 1]} : vector<8x64xf32> to vector<8x16xf32>
    %42 = vector.extract_strided_slice %7 {offsets = [0, 32], sizes = [8, 16], strides = [1, 1]} : vector<8x64xf32> to vector<8x16xf32>
    %43 = vector.extract_strided_slice %8 {offsets = [0, 32], sizes = [8, 16], strides = [1, 1]} : vector<8x64xf32> to vector<8x16xf32>
    %cst_16 = arith.constant dense<0.000000e+00> : vector<8x8xf32>
    %44 = tpu.matmul %41, %42, %cst_16 {dimension_numbers = #tpu.dot_dimension_numbers<[1], [1], [0], [0], [0, 0, 1, 0], [], []>} : vector<8x16xf32>, vector<8x16xf32>, vector<8x8xf32> -> vector<8x8xf32>
    %cst_17 = arith.constant dense<0xFF800000> : vector<8xf32>
    %45 = vector.multi_reduction <maximumf>, %44, %cst_17 [1] : vector<8x8xf32> to vector<8xf32>
    %46 = vector.shape_cast %45 : vector<8xf32> to vector<8x1xf32>
    %47 = vector.broadcast %46 : vector<8x1xf32> to vector<8x8xf32>
    %48 = arith.subf %44, %47 : vector<8x8xf32>
    %49 = math.exp %48 : vector<8x8xf32>
    %cst_18 = arith.constant dense<0.000000e+00> : vector<8xf32>
    %50 = vector.multi_reduction <add>, %49, %cst_18 [1] : vector<8x8xf32> to vector<8xf32>
    %51 = vector.shape_cast %50 : vector<8xf32> to vector<8x1xf32>
    %52 = tpu.reciprocal %51 {approx = true} : vector<8x1xf32> -> vector<8x1xf32>
    %53 = vector.broadcast %52 : vector<8x1xf32> to vector<8x8xf32>
    %54 = arith.mulf %49, %53 : vector<8x8xf32>
    %cst_19 = arith.constant dense<0.000000e+00> : vector<8x16xf32>
    %55 = tpu.matmul %54, %43, %cst_19 {dimension_numbers = #tpu.dot_dimension_numbers<[1], [0], [0], [1], [0, 0, 1, 1], [], []>} : vector<8x8xf32>, vector<8x16xf32>, vector<8x16xf32> -> vector<8x16xf32>
    %c0_20 = arith.constant 0 : index
    %c32 = arith.constant 32 : index
    %56 = vector.load %arg6[%c0_20, %c32] : memref<8x64xf32, #tpu.memory_space<vmem>>, vector<8x16xf32>
    tpu.vector_store %arg6[%c0_20, %c32], %55 {strides = array<i32>} : memref<8x64xf32, #tpu.memory_space<vmem>>, vector<8x16xf32>,
    %57 = vector.extract_strided_slice %6 {offsets = [0, 48], sizes = [8, 16], strides = [1, 1]} : vector<8x64xf32> to vector<8x16xf32>
    %58 = vector.extract_strided_slice %7 {offsets = [0, 48], sizes = [8, 16], strides = [1, 1]} : vector<8x64xf32> to vector<8x16xf32>
    %59 = vector.extract_strided_slice %8 {offsets = [0, 48], sizes = [8, 16], strides = [1, 1]} : vector<8x64xf32> to vector<8x16xf32>
    %cst_21 = arith.constant dense<0.000000e+00> : vector<8x8xf32>
    %60 = tpu.matmul %57, %58, %cst_21 {dimension_numbers = #tpu.dot_dimension_numbers<[1], [1], [0], [0], [0, 0, 1, 0], [], []>} : vector<8x16xf32>, vector<8x16xf32>, vector<8x8xf32> -> vector<8x8xf32>
    %cst_22 = arith.constant dense<0xFF800000> : vector<8xf32>
    %61 = vector.multi_reduction <maximumf>, %60, %cst_22 [1] : vector<8x8xf32> to vector<8xf32>
    %62 = vector.shape_cast %61 : vector<8xf32> to vector<8x1xf32>
    %63 = vector.broadcast %62 : vector<8x1xf32> to vector<8x8xf32>
    %64 = arith.subf %60, %63 : vector<8x8xf32>
    %65 = math.exp %64 : vector<8x8xf32>
    %cst_23 = arith.constant dense<0.000000e+00> : vector<8xf32>
    %66 = vector.multi_reduction <add>, %65, %cst_23 [1] : vector<8x8xf32> to vector<8xf32>
    %67 = vector.shape_cast %66 : vector<8xf32> to vector<8x1xf32>
    %68 = tpu.reciprocal %67 {approx = true} : vector<8x1xf32> -> vector<8x1xf32>
    %69 = vector.broadcast %68 : vector<8x1xf32> to vector<8x8xf32>
    %70 = arith.mulf %65, %69 : vector<8x8xf32>
    %cst_24 = arith.constant dense<0.000000e+00> : vector<8x16xf32>
    %71 = tpu.matmul %70, %59, %cst_24 {dimension_numbers = #tpu.dot_dimension_numbers<[1], [0], [0], [1], [0, 0, 1, 1], [], []>} : vector<8x8xf32>, vector<8x16xf32>, vector<8x16xf32> -> vector<8x16xf32>
    %c0_25 = arith.constant 0 : index
    %c48 = arith.constant 48 : index
    %72 = vector.load %arg6[%c0_25, %c48] : memref<8x64xf32, #tpu.memory_space<vmem>>, vector<8x16xf32>
    tpu.vector_store %arg6[%c0_25, %c48], %71 {strides = array<i32>} : memref<8x64xf32, #tpu.memory_space<vmem>>, vector<8x16xf32>,
    %c0_26 = arith.constant 0 : index
    %c0_27 = arith.constant 0 : index
    %73 = vector.load %arg6[%c0_26, %c0_27] : memref<8x64xf32, #tpu.memory_space<vmem>>, vector<8x64xf32>
    %c0_28 = arith.constant 0 : index
    %c0_29 = arith.constant 0 : index
    %74 = vector.load %arg3[%c0_28, %c0_29] : memref<64x32xf32, #tpu.memory_space<vmem>>, vector<64x32xf32>
    %cst_30 = arith.constant dense<0.000000e+00> : vector<8x32xf32>
    %75 = tpu.matmul %73, %74, %cst_30 {dimension_numbers = #tpu.dot_dimension_numbers<[1], [0], [0], [1], [0, 0, 1, 1], [], []>} : vector<8x64xf32>, vector<64x32xf32>, vector<8x32xf32> -> vector<8x32xf32>
    %c0_31 = arith.constant 0 : index
    %c0_32 = arith.constant 0 : index
    %76 = vector.load %arg4[%c0_31, %c0_32] : memref<1x32xf32, #tpu.memory_space<vmem>>, vector<1x32xf32>
    %77 = vector.broadcast %76 : vector<1x32xf32> to vector<8x32xf32>
    %78 = arith.addf %75, %77 : vector<8x32xf32>
    %c0_33 = arith.constant 0 : index
    %c0_34 = arith.constant 0 : index
    %c0_35 = arith.constant 0 : index
    %79 = vector.load %arg5[%c0_33, %c0_34, %c0_35] : memref<1x8x32xf32, #tpu.memory_space<vmem>>, vector<1x8x32xf32>
    %80 = vector.shape_cast %79 : vector<1x8x32xf32> to vector<8x32xf32>
    %81 = vector.shape_cast %78 : vector<8x32xf32> to vector<1x8x32xf32>
    tpu.vector_store %arg5[%c0_33, %c0_34, %c0_35], %81 {strides = array<i32>} : memref<1x8x32xf32, #tpu.memory_space<vmem>>, vector<1x8x32xf32>,
    return
  }
  func.func @transform_0(%arg0: i32) -> (i32, i32, i32) {
    %c0_i32 = arith.constant 0 : i32
    %c0_i32_0 = arith.constant 0 : i32
    %c0_i32_1 = arith.constant 0 : i32
    return %arg0, %c0_i32, %c0_i32_0 : i32, i32, i32
  }
  func.func @transform_1(%arg0: i32) -> (i32, i32) {
    %c0_i32 = arith.constant 0 : i32
    %c0_i32_0 = arith.constant 0 : i32
    %c0_i32_1 = arith.constant 0 : i32
    return %c0_i32, %c0_i32_0 : i32, i32
  }
  func.func @transform_2(%arg0: i32) -> (i32, i32) {
    %c0_i32 = arith.constant 0 : i32
    %c0_i32_0 = arith.constant 0 : i32
    %c0_i32_1 = arith.constant 0 : i32
    return %c0_i32, %c0_i32_0 : i32, i32
  }
  func.func @transform_3(%arg0: i32) -> (i32, i32) {
    %c0_i32 = arith.constant 0 : i32
    %c0_i32_0 = arith.constant 0 : i32
    %c0_i32_1 = arith.constant 0 : i32
    return %c0_i32, %c0_i32_0 : i32, i32
  }
  func.func @transform_4(%arg0: i32) -> (i32, i32, i32) {
    %c0_i32 = arith.constant 0 : i32
    %c0_i32_0 = arith.constant 0 : i32
    %c0_i32_1 = arith.constant 0 : i32
    return %arg0, %c0_i32, %c0_i32_0 : i32, i32, i32
  }
}

</mosaic_0001>

<llo_original>
// kernel: tpu_custom_call.1
$region0: #{tpu_custom_call.1}
  #allocation0 [shape = 'u32[]', space=smem, size = 0x4, offset = 0x4, fixed_abs, tag = 'smem constant byte address 0x4 - core index']
  #allocation1 [shape = 'u32[144,128]{1,0:T(1,128)}', space=vmem, size = 0x12000, scoped, tag = 'internal scratch']
  #allocation2 [shape = 'f32[8,64]{1,0:T(8,128)}', space=vmem, size = 0x1000, scoped, tag = 'scratch operand']
  %s0 = inlined_call_operand.vmem [shape: f32[2,8,32], index: 0, kind: input, shape index: {}]
  %s1 = inlined_call_operand.vmem [shape: f32[32,192], index: 1, kind: input, shape index: {}]
  %s2 = inlined_call_operand.vmem [shape: f32[64,32], index: 2, kind: input, shape index: {}]
  %s3 = inlined_call_operand.vmem [shape: f32[1,32], index: 3, kind: input, shape index: {}]
  %s4 = inlined_call_operand.hbm [shape: f32[2,8,32], index: 4, kind: output, shape index: {}]
  %s5 = sld [smem:[#allocation0]]
  $region49: #{tpu_custom_call.1} parent=0
    _
  %s7 = ssub.s32 1, %s5
  %s8 = scalar_select 0, %s7, %s5
  $region1: #{tpu_custom_call.1} parent=0
    #allocation3 [shape = 'u8[8192]{0}', space=vmem, size = 0x2000, scoped, tag = 'output window, operand 0']
    #allocation4 [shape = 's32[2]{0}', space=sflag, size = 0x8, scoped, tag = 'scoped memory for tpu_custom_call.1']
    %9 = vsyncpa [#allocation4], 0
    %s10 = scalar_lea.sflag [#allocation4], 1
    %11 = vsyncpa %s10, 0
    loop: start=0, step=1, limit=4
    $region2: #{tpu_custom_call.1} parent=1 // loop_pre_header
      _
    $region3: #{tpu_custom_call.1} parent=1 // loop_header
      %s13 = sphi 0, %s17
      %p14 = scmp.ge.s32.totalorder %s13, 4
      %s23 = sphi 0, %s25
      %s26 = sphi 0, %s23
      %s27 = sphi 0, %s26
      %s43 = sphi 0, %s27
      %s47 = sphi 0, %s47
      %s49 = sphi 0, %s47
      %s50 = sphi 0, %s49
      %s64 = sphi 0, %s50
      %s68 = sphi 0, %s68
      %s70 = sphi 0, %s68
      %s71 = sphi 0, %s70
      %s85 = sphi 0, %s71
      %s89 = sphi 0, %s89
      %s91 = sphi 0, %s89
      %s92 = sphi 0, %s91
      %s106 = sphi 0, %s92
      %s112 = sphi 0, %s114
      %s115 = sphi 0, %s112
      %s116 = sphi 0, %s115
      %s132 = sphi 0, %s116
    $region4: #{tpu_custom_call.1} parent=1 // loop_header_branch
      %16 = sbr.rel (%p14) target = $region8
    $region5: #{tpu_custom_call.1} parent=1 // loop_body
      %s18 = ssub.s32 %s13, 1
      %s19 = ssub.s32 %s13, 2
      %s20 = sadd.s32 %s13, 1
      %s21 = ssub.s32 %s13, %s20
      %p22 = scmp.eq.s32.totalorder %s21, 0
      %s24 = sadd.s32 %s23, 1
      %s25 = scalar_select %p22, %s23, %s24
      %p28 = pneg %p22
      %p29 = scmp.eq.s32.totalorder %s13, 1
      %p30 = por %p28, %p29
      %p31 = scmp.ne.s32.totalorder %s23, %s26
      %p32 = scmp.eq.s32.totalorder %s13, 0
      %p33 = por %p31, %p32
      %p34 = scmp.ne.s32.totalorder %s23, %s26
      %p35 = scmp.eq.s32.totalorder %s18, 1
      %p36 = por %p34, %p35
      %p37 = scmp.ne.s32.totalorder %s26, %s27
      %p38 = scmp.eq.s32.totalorder %s18, 0
      %p39 = por %p37, %p38
      %p40 = scmp.ne.s32.totalorder %s26, %s27
      %p41 = scmp.eq.s32.totalorder %s19, 1
      %p42 = por %p40, %p41
      %p44 = scmp.ne.s32.totalorder %s27, %s43
      %p45 = scmp.eq.s32.totalorder %s19, 0
      %p46 = por %p44, %p45
      %s48 = sadd.s32 %s47, 1
      %p51 = scmp.eq.s32.totalorder %s13, 1
      %p52 = scmp.ne.s32.totalorder %s47, %s49
      %p53 = scmp.eq.s32.totalorder %s13, 0
      %p54 = por %p52, %p53
      %p55 = scmp.ne.s32.totalorder %s47, %s49
      %p56 = scmp.eq.s32.totalorder %s18, 1
      %p57 = por %p55, %p56
      %p58 = scmp.ne.s32.totalorder %s49, %s50
      %p59 = scmp.eq.s32.totalorder %s18, 0
      %p60 = por %p58, %p59
      %p61 = scmp.ne.s32.totalorder %s49, %s50
      %p62 = scmp.eq.s32.totalorder %s19, 1
      %p63 = por %p61, %p62
      %p65 = scmp.ne.s32.totalorder %s50, %s64
      %p66 = scmp.eq.s32.totalorder %s19, 0
      %p67 = por %p65, %p66
      %s69 = sadd.s32 %s68, 1
      %p72 = scmp.eq.s32.totalorder %s13, 1
      %p73 = scmp.ne.s32.totalorder %s68, %s70
      %p74 = scmp.eq.s32.totalorder %s13, 0
      %p75 = por %p73, %p74
      %p76 = scmp.ne.s32.totalorder %s68, %s70
      %p77 = scmp.eq.s32.totalorder %s18, 1
      %p78 = por %p76, %p77
      %p79 = scmp.ne.s32.totalorder %s70, %s71
      %p80 = scmp.eq.s32.totalorder %s18, 0
      %p81 = por %p79, %p80
      %p82 = scmp.ne.s32.totalorder %s70, %s71
      %p83 = scmp.eq.s32.totalorder %s19, 1
      %p84 = por %p82, %p83
      %p86 = scmp.ne.s32.totalorder %s71, %s85
      %p87 = scmp.eq.s32.totalorder %s19, 0
      %p88 = por %p86, %p87
      %s90 = sadd.s32 %s89, 1
      %p93 = scmp.eq.s32.totalorder %s13, 1
      %p94 = scmp.ne.s32.totalorder %s89, %s91
      %p95 = scmp.eq.s32.totalorder %s13, 0
      %p96 = por %p94, %p95
      %p97 = scmp.ne.s32.totalorder %s89, %s91
      %p98 = scmp.eq.s32.totalorder %s18, 1
      %p99 = por %p97, %p98
      %p100 = scmp.ne.s32.totalorder %s91, %s92
      %p101 = scmp.eq.s32.totalorder %s18, 0
      %p102 = por %p100, %p101
      %p103 = scmp.ne.s32.totalorder %s91, %s92
      %p104 = scmp.eq.s32.totalorder %s19, 1
      %p105 = por %p103, %p104
      %p107 = scmp.ne.s32.totalorder %s92, %s106
      %p108 = scmp.eq.s32.totalorder %s19, 0
      %p109 = por %p107, %p108
      %s110 = ssub.s32 %s13, %s20
      %p111 = scmp.eq.s32.totalorder %s110, 0
      %s113 = sadd.s32 %s112, 1
      %s114 = scalar_select %p111, %s112, %s113
      %p117 = pneg %p111
      %p118 = scmp.eq.s32.totalorder %s13, 1
      %p119 = por %p117, %p118
      %p120 = scmp.ne.s32.totalorder %s112, %s115
      %p121 = scmp.eq.s32.totalorder %s13, 0
      %p122 = por %p120, %p121
      %p123 = scmp.ne.s32.totalorder %s112, %s115
      %p124 = scmp.eq.s32.totalorder %s18, 1
      %p125 = por %p123, %p124
      %p126 = scmp.ne.s32.totalorder %s115, %s116
      %p127 = scmp.eq.s32.totalorder %s18, 0
      %p128 = por %p126, %p127
      %p129 = scmp.ne.s32.totalorder %s115, %s116
      %p130 = scmp.eq.s32.totalorder %s19, 1
      %p131 = por %p129, %p130
      %p133 = scmp.ne.s32.totalorder %s116, %s132
      %p134 = scmp.eq.s32.totalorder %s19, 0
      %p135 = por %p133, %p134
      %p136 = scmp.le.s32.totalorder 1, %s13
      %p137 = scmp.lt.s32.totalorder %s13, 3
      %p138 = pnand %p136, %p137
      %p139 = pneg %p138
      // Predicated region
      $region9: #{tpu_custom_call.1} parent=5 // pred_check
        _
      $region10: #{tpu_custom_call.1} parent=5 // pred_check_branch
        %141 = sbr.rel (%p138) target = $region12
      $region11: #{tpu_custom_call.1} parent=5 // pred_region
        %s142 = ssub.s32 %s13, 1
        // Predicated region
        $region13: #{tpu_custom_call.1} parent=11 // pred_check
          %p143 = pneg %p60
        $region14: #{tpu_custom_call.1} parent=11 // pred_check_branch
          %145 = sbr.rel (%p143) target = $region16
        $region15: #{tpu_custom_call.1} parent=11 // pred_region
          _
        $region16: #{tpu_custom_call.1} parent=11 // pred_fallthru
          _
        // Predicated region
        $region17: #{tpu_custom_call.1} parent=11 // pred_check
          %p146 = pneg %p81
        $region18: #{tpu_custom_call.1} parent=11 // pred_check_branch
          %148 = sbr.rel (%p146) target = $region20
        $region19: #{tpu_custom_call.1} parent=11 // pred_region
          _
        $region20: #{tpu_custom_call.1} parent=11 // pred_fallthru
          _
        // Predicated region
        $region21: #{tpu_custom_call.1} parent=11 // pred_check
          %p149 = pneg %p102
        $region22: #{tpu_custom_call.1} parent=11 // pred_check_branch
          %151 = sbr.rel (%p149) target = $region24
        $region23: #{tpu_custom_call.1} parent=11 // pred_region
          _
        $region24: #{tpu_custom_call.1} parent=11 // pred_fallthru
          _
      $region12: #{tpu_custom_call.1} parent=5 // pred_fallthru
        _
      %p152 = scmp.lt.s32.totalorder %s13, 2
      // Predicated region
      $region25: #{tpu_custom_call.1} parent=5 // pred_check
        %p153 = pneg %p152
      $region26: #{tpu_custom_call.1} parent=5 // pred_check_branch
        %155 = sbr.rel (%p153) target = $region28
      $region27: #{tpu_custom_call.1} parent=5 // pred_region
        // Predicated region
        $region29: #{tpu_custom_call.1} parent=27 // pred_check
          %p156 = pneg %p33
        $region30: #{tpu_custom_call.1} parent=27 // pred_check_branch
          %158 = sbr.rel (%p156) target = $region32
        $region31: #{tpu_custom_call.1} parent=27 // pred_region
          %p159 = scmp.lt.s32.totalorder %s13, 1
          %s160 = scalar_select %p159, %s13, 1
          %s161 = smul.addr %s160, 8
          %s162 = scalar_lea.vmem %s0, %s161
        $region32: #{tpu_custom_call.1} parent=27 // pred_fallthru
          _
      $region28: #{tpu_custom_call.1} parent=5 // pred_fallthru
        _
      %p163 = scmp.le.s32.totalorder 1, %s13
      %p164 = scmp.lt.s32.totalorder %s13, 3
      %p165 = pnand %p163, %p164
      %p166 = pneg %p165
      // Predicated region
      $region33: #{tpu_custom_call.1} parent=5 // pred_check
        _
      $region34: #{tpu_custom_call.1} parent=5 // pred_check_branch
        %168 = sbr.rel (%p165) target = $region36
      $region35: #{tpu_custom_call.1} parent=5 // pred_region
        %s169 = ssub.s32 %s13, 1
        %p170 = scmp.lt.s32.totalorder %s18, 1
        %s171 = scalar_select %p170, %s18, 1
        %s172 = smul.addr %s171, 8
        %s173 = scalar_lea.vmem %s0, %s172
        %p174 = pneg %p39
        %p175 = pneg %p36
        %p176 = pneg %p60
        %p177 = pneg %p57
        %p178 = pneg %p81
        %p179 = pneg %p78
        %p180 = pneg %p102
        %p181 = pneg %p99
        %p182 = pneg %p128
        %p183 = pneg %p125
        %s184 = sand.u32 %s115, 1
        %s185 = scalar_lea.sflag [#allocation4], %s184
        %s186 = sand.u32 %s115, 1
        %s187 = smul.addr %s186, 8
        %s188 = scalar_lea.vmem [#allocation3], %s187
        %p189 = scmp.lt.s32.totalorder %s18, 1
        %s190 = scalar_select %p189, %s18, 1
        %s191 = smul.addr %s190, 8
        %s192 = scalar_lea.vmem %s0, %s191
        %v193 = vld [vmem:[%s192] sm:$0xff]
        %v194 = vld [vmem:[%s1] sm:$0xff]
        %v195 = vld [vmem:[%s1 + $0x8] sm:$0xff]
        %v196 = vld [vmem:[%s1 + $0x10] sm:$0xff]
        %v197 = vld [vmem:[%s1 + $0x18] sm:$0xff]
        %v198 = vld [vmem:[%s1 + $0x20] sm:$0xff]
        %v199 = vld [vmem:[%s1 + $0x28] sm:$0xff]
        %v200 = vld [vmem:[%s1 + $0x30] sm:$0xff]
        %v201 = vld [vmem:[%s1 + $0x38] sm:$0xff]
        %vm202 = vcmask 261120
        %v204 = vsel %vm202, %v193, 0
        %206 = vmatprep.subr.mxu0 %v195
        %207 = vmatpush1.msra.mxu0 %v194
        %208 = vmatprep.subr.mxu0 %v197
        %209 = vmatpush1.msra.mxu0 %v196
        %210 = vmatprep.subr.mxu0 %v199
        %211 = vmatpush1.msra.mxu0 %v198
        %212 = vmatprep.subr.mxu0 %v201
        %213 = vmatpush1.msra.mxu0 %v200
        %214 = vmatprep.subr.mxu0 0.0
        %215 = vmatpush1.msra.mxu0 0.0
        %216 = vmatprep.subr.mxu0 0.0
        %217 = vmatpush1.msra.mxu0 0.0
        %218 = vmatprep.subr.mxu0 0.0
        %219 = vmatpush1.msra.mxu0 0.0
        %220 = vmatprep.subr.mxu0 0.0
        %221 = vmatpush1.msra.mxu0 0.0
        %222 = vmatprep.subr.mxu0 0.0
        %223 = vmatpush1.msra.mxu0 0.0
        %224 = vmatprep.subr.mxu0 0.0
        %225 = vmatpush1.msra.mxu0 0.0
        %226 = vmatprep.subr.mxu0 0.0
        %227 = vmatpush1.msra.mxu0 0.0
        %228 = vmatprep.subr.mxu0 0.0
        %229 = vmatpush1.msra.mxu0 0.0
        %230 = vmatprep.subr.mxu0 0.0
        %231 = vmatpush1.msra.mxu0 0.0
        %232 = vmatprep.subr.mxu0 0.0
        %233 = vmatpush1.msra.mxu0 0.0
        %234 = vmatprep.subr.mxu0 0.0
        %235 = vmatpush1.msra.mxu0 0.0
        %236 = vmatprep.subr.mxu0 0.0
        %237 = vmatpush1.msra.mxu0 0.0
        %238 = vmatprep.subr.mxu0 0.0
        %239 = vmatpush1.msra.mxu0 0.0
        %240 = vmatprep.subr.mxu0 0.0
        %241 = vmatpush1.msra.mxu0 0.0
        %242 = vmatprep.subr.mxu0 0.0
        %243 = vmatpush1.msra.mxu0 0.0
        %244 = vmatprep.subr.mxu0 0.0
        %245 = vmatpush1.msra.mxu0 0.0
        %246 = vmatprep.subr.mxu0 0.0
        %247 = vmatpush1.msra.mxu0 0.0
        %248 = vmatprep.subr.mxu0 0.0
        %249 = vmatpush1.msra.mxu0 0.0
        %250 = vmatprep.subr.mxu0 0.0
        %251 = vmatpush1.msra.mxu0 0.0
        %252 = vmatprep.subr.mxu0 0.0
        %253 = vmatpush1.msra.mxu0 0.0
        %254 = vmatprep.subr.mxu0 0.0
        %255 = vmatpush1.msra.mxu0 0.0
        %256 = vmatprep.subr.mxu0 0.0
        %257 = vmatpush1.msra.mxu0 0.0
        %258 = vmatprep.subr.mxu0 0.0
        %259 = vmatpush1.msra.mxu0 0.0
        %260 = vmatprep.subr.mxu0 0.0
        %261 = vmatpush1.msra.mxu0 0.0
        %262 = vmatprep.subr.mxu0 0.0
        %263 = vmatpush1.msra.mxu0 0.0
        %264 = vmatprep.subr.mxu0 0.0
        %265 = vmatpush1.msra.mxu0 0.0
        %266 = vmatprep.subr.mxu0 0.0
        %267 = vmatpush1.msra.mxu0 0.0
        %268 = vmatprep.subr.mxu0 0.0
        %269 = vmatpush1.msra.mxu0 0.0
        %270 = vmatprep.mubr.f32.mxu0 0.0
        %271 = vmatmul.mubr.f32.gmra.mrb[0].mxu0 %v204
        %v272 = vpop.f32.mrb[0].mxu0
        %v273 = vadd.f32 0.0, %v272
        %v274 = vpop.f32.mrb[0].mxu0
        %v275 = vadd.f32 0.0, %v274
        %276 = vdwg.mxu0
        %v277 = vmul.f32 %v273, 0.17677669
        %279 = vrot.lane.b32.xlu0 %v273, 64
        %v280 = vpop.permute.xlu0 %279
        %vm281 = vcmask 130048
        %v283 = vsel %vm281, %v277, 0
        %v285 = vsel %vm281, %v280, 0
        %287 = vmatprep.subr.mxu0 0.0
        %288 = vmatpush1.xpose.msra.mxu0 %v285
        %289 = vmatprep.subr.mxu0 0.0
        %290 = vmatpush1.xpose.msra.mxu0 0.0
        %291 = vmatprep.subr.mxu0 0.0
        %292 = vmatpush1.xpose.msra.mxu0 0.0
        %293 = vmatprep.subr.mxu0 0.0
        %294 = vmatpush1.xpose.msra.mxu0 0.0
        %295 = vmatprep.subr.mxu0 0.0
        %296 = vmatpush1.xpose.msra.mxu0 0.0
        %297 = vmatprep.subr.mxu0 0.0
        %298 = vmatpush1.xpose.msra.mxu0 0.0
        %299 = vmatprep.subr.mxu0 0.0
        %300 = vmatpush1.xpose.msra.mxu0 0.0
        %301 = vmatprep.subr.mxu0 0.0
        %302 = vmatpush1.xpose.msra.mxu0 0.0
        %303 = vmatprep.subr.mxu0 0.0
        %304 = vmatpush1.xpose.msra.mxu0 0.0
        %305 = vmatprep.subr.mxu0 0.0
        %306 = vmatpush1.xpose.msra.mxu0 0.0
        %307 = vmatprep.subr.mxu0 0.0
        %308 = vmatpush1.xpose.msra.mxu0 0.0
        %309 = vmatprep.subr.mxu0 0.0
        %310 = vmatpush1.xpose.msra.mxu0 0.0
        %311 = vmatprep.subr.mxu0 0.0
        %312 = vmatpush1.xpose.msra.mxu0 0.0
        %313 = vmatprep.subr.mxu0 0.0
        %314 = vmatpush1.xpose.msra.mxu0 0.0
        %315 = vmatprep.subr.mxu0 0.0
        %316 = vmatpush1.xpose.msra.mxu0 0.0
        %317 = vmatprep.subr.mxu0 0.0
        %318 = vmatpush1.xpose.msra.mxu0 0.0
        %319 = vmatprep.subr.mxu0 0.0
        %320 = vmatpush1.xpose.msra.mxu0 0.0
        %321 = vmatprep.subr.mxu0 0.0
        %322 = vmatpush1.xpose.msra.mxu0 0.0
        %323 = vmatprep.subr.mxu0 0.0
        %324 = vmatpush1.xpose.msra.mxu0 0.0
        %325 = vmatprep.subr.mxu0 0.0
        %326 = vmatpush1.xpose.msra.mxu0 0.0
        %327 = vmatprep.subr.mxu0 0.0
        %328 = vmatpush1.xpose.msra.mxu0 0.0
        %329 = vmatprep.subr.mxu0 0.0
        %330 = vmatpush1.xpose.msra.mxu0 0.0
        %331 = vmatprep.subr.mxu0 0.0
        %332 = vmatpush1.xpose.msra.mxu0 0.0
        %333 = vmatprep.subr.mxu0 0.0
        %334 = vmatpush1.xpose.msra.mxu0 0.0
        %335 = vmatprep.subr.mxu0 0.0
        %336 = vmatpush1.xpose.msra.mxu0 0.0
        %337 = vmatprep.subr.mxu0 0.0
        %338 = vmatpush1.xpose.msra.mxu0 0.0
        %339 = vmatprep.subr.mxu0 0.0
        %340 = vmatpush1.xpose.msra.mxu0 0.0
        %341 = vmatprep.subr.mxu0 0.0
        %342 = vmatpush1.xpose.msra.mxu0 0.0
        %343 = vmatprep.subr.mxu0 0.0
        %344 = vmatpush1.xpose.msra.mxu0 0.0
        %345 = vmatprep.subr.mxu0 0.0
        %346 = vmatpush1.xpose.msra.mxu0 0.0
        %347 = vmatprep.subr.mxu0 0.0
        %348 = vmatpush1.xpose.msra.mxu0 0.0
        %349 = vmatprep.subr.mxu0 0.0
        %350 = vmatpush1.xpose.msra.mxu0 0.0
        %351 = vmatprep.mubr.f32.mxu0 0.0
        %352 = vmatmul.mubr.f32.gmra.mrb[0].mxu0 %v283
        %v353 = vpop.f32.mrb[0].mxu0
        %v354 = vadd.f32 0.0, %v353
        %v355 = vpop.f32.mrb[0].mxu0
        %356 = vdwg.mxu0
        %vm357 = vcmask 64512
        %v358 = vsel %vm357, %v354, -inf
        %359 = vmax.xlane.f32.xlu0 %v358
        %v360 = vpop.xlane.xlu0 %359
        %v361 = vsub.f32 %v354, %v360
        %v362 = vmul.f32 %v361, 1.442695
        %v363 = vpow.pop %v362
        %v364 = vsel %vm357, %v363, 0.0
        %365 = vadd.xlane.f32.xlu0 %v364
        %v366 = vpop.xlane.xlu0 %365
        %v367 = vrcp.pop %v366
        %v368 = vmul.f32 %v363, %v367
        %v370 = vsel %vm357, %v368, 0
        %372 = vmatprep.subr.mxu0 0.0
        %373 = vmatpush1.msra.mxu0 %v275
        %374 = vmatprep.subr.mxu0 0.0
        %375 = vmatpush1.msra.mxu0 0.0
        %376 = vmatprep.subr.mxu0 0.0
        %377 = vmatpush1.msra.mxu0 0.0
        %378 = vmatprep.subr.mxu0 0.0
        %379 = vmatpush1.msra.mxu0 0.0
        %380 = vmatprep.subr.mxu0 0.0
        %381 = vmatpush1.msra.mxu0 0.0
        %382 = vmatprep.subr.mxu0 0.0
        %383 = vmatpush1.msra.mxu0 0.0
        %384 = vmatprep.subr.mxu0 0.0
        %385 = vmatpush1.msra.mxu0 0.0
        %386 = vmatprep.subr.mxu0 0.0
        %387 = vmatpush1.msra.mxu0 0.0
        %388 = vmatprep.subr.mxu0 0.0
        %389 = vmatpush1.msra.mxu0 0.0
        %390 = vmatprep.subr.mxu0 0.0
        %391 = vmatpush1.msra.mxu0 0.0
        %392 = vmatprep.subr.mxu0 0.0
        %393 = vmatpush1.msra.mxu0 0.0
        %394 = vmatprep.subr.mxu0 0.0
        %395 = vmatpush1.msra.mxu0 0.0
        %396 = vmatprep.subr.mxu0 0.0
        %397 = vmatpush1.msra.mxu0 0.0
        %398 = vmatprep.subr.mxu0 0.0
        %399 = vmatpush1.msra.mxu0 0.0
        %400 = vmatprep.subr.mxu0 0.0
        %401 = vmatpush1.msra.mxu0 0.0
        %402 = vmatprep.subr.mxu0 0.0
        %403 = vmatpush1.msra.mxu0 0.0
        %404 = vmatprep.subr.mxu0 0.0
        %405 = vmatpush1.msra.mxu0 0.0
        %406 = vmatprep.subr.mxu0 0.0
        %407 = vmatpush1.msra.mxu0 0.0
        %408 = vmatprep.subr.mxu0 0.0
        %409 = vmatpush1.msra.mxu0 0.0
        %410 = vmatprep.subr.mxu0 0.0
        %411 = vmatpush1.msra.mxu0 0.0
        %412 = vmatprep.subr.mxu0 0.0
        %413 = vmatpush1.msra.mxu0 0.0
        %414 = vmatprep.subr.mxu0 0.0
        %415 = vmatpush1.msra.mxu0 0.0
        %416 = vmatprep.subr.mxu0 0.0
        %417 = vmatpush1.msra.mxu0 0.0
        %418 = vmatprep.subr.mxu0 0.0
        %419 = vmatpush1.msra.mxu0 0.0
        %420 = vmatprep.subr.mxu0 0.0
        %421 = vmatpush1.msra.mxu0 0.0
        %422 = vmatprep.subr.mxu0 0.0
        %423 = vmatpush1.msra.mxu0 0.0
        %424 = vmatprep.subr.mxu0 0.0
        %425 = vmatpush1.msra.mxu0 0.0
        %426 = vmatprep.subr.mxu0 0.0
        %427 = vmatpush1.msra.mxu0 0.0
        %428 = vmatprep.subr.mxu0 0.0
        %429 = vmatpush1.msra.mxu0 0.0
        %430 = vmatprep.subr.mxu0 0.0
        %431 = vmatpush1.msra.mxu0 0.0
        %432 = vmatprep.subr.mxu0 0.0
        %433 = vmatpush1.msra.mxu0 0.0
        %434 = vmatprep.subr.mxu0 0.0
        %435 = vmatpush1.msra.mxu0 0.0
        %436 = vmatprep.mubr.f32.mxu0 0.0
        %437 = vmatmul.mubr.f32.gmra.mrb[0].mxu0 %v370
        %v438 = vpop.f32.mrb[0].mxu0
        %v439 = vadd.f32 0.0, %v438
        %v440 = vpop.f32.mrb[0].mxu0
        %441 = vdwg.mxu0
        %442 = vst.msk [vmem:[#allocation2] sm:$0xff] %vm281, %v439
        %443 = vrot.lane.b32.xlu0 %v277, 112
        %v444 = vpop.permute.xlu0 %443
        %445 = vrot.lane.b32.xlu0 %v273, 48
        %v446 = vpop.permute.xlu0 %445
        %v447 = vsel %vm281, %v444, 0
        %v449 = vsel %vm281, %v446, 0
        %451 = vmatprep.subr.mxu0 0.0
        %452 = vmatpush1.xpose.msra.mxu0 %v449
        %453 = vmatprep.subr.mxu0 0.0
        %454 = vmatpush1.xpose.msra.mxu0 0.0
        %455 = vmatprep.subr.mxu0 0.0
        %456 = vmatpush1.xpose.msra.mxu0 0.0
        %457 = vmatprep.subr.mxu0 0.0
        %458 = vmatpush1.xpose.msra.mxu0 0.0
        %459 = vmatprep.subr.mxu0 0.0
        %460 = vmatpush1.xpose.msra.mxu0 0.0
        %461 = vmatprep.subr.mxu0 0.0
        %462 = vmatpush1.xpose.msra.mxu0 0.0
        %463 = vmatprep.subr.mxu0 0.0
        %464 = vmatpush1.xpose.msra.mxu0 0.0
        %465 = vmatprep.subr.mxu0 0.0
        %466 = vmatpush1.xpose.msra.mxu0 0.0
        %467 = vmatprep.subr.mxu0 0.0
        %468 = vmatpush1.xpose.msra.mxu0 0.0
        %469 = vmatprep.subr.mxu0 0.0
        %470 = vmatpush1.xpose.msra.mxu0 0.0
        %471 = vmatprep.subr.mxu0 0.0
        %472 = vmatpush1.xpose.msra.mxu0 0.0
        %473 = vmatprep.subr.mxu0 0.0
        %474 = vmatpush1.xpose.msra.mxu0 0.0
        %475 = vmatprep.subr.mxu0 0.0
        %476 = vmatpush1.xpose.msra.mxu0 0.0
        %477 = vmatprep.subr.mxu0 0.0
        %478 = vmatpush1.xpose.msra.mxu0 0.0
        %479 = vmatprep.subr.mxu0 0.0
        %480 = vmatpush1.xpose.msra.mxu0 0.0
        %481 = vmatprep.subr.mxu0 0.0
        %482 = vmatpush1.xpose.msra.mxu0 0.0
        %483 = vmatprep.subr.mxu0 0.0
        %484 = vmatpush1.xpose.msra.mxu0 0.0
        %485 = vmatprep.subr.mxu0 0.0
        %486 = vmatpush1.xpose.msra.mxu0 0.0
        %487 = vmatprep.subr.mxu0 0.0
        %488 = vmatpush1.xpose.msra.mxu0 0.0
        %489 = vmatprep.subr.mxu0 0.0
        %490 = vmatpush1.xpose.msra.mxu0 0.0
        %491 = vmatprep.subr.mxu0 0.0
        %492 = vmatpush1.xpose.msra.mxu0 0.0
        %493 = vmatprep.subr.mxu0 0.0
        %494 = vmatpush1.xpose.msra.mxu0 0.0
        %495 = vmatprep.subr.mxu0 0.0
        %496 = vmatpush1.xpose.msra.mxu0 0.0
        %497 = vmatprep.subr.mxu0 0.0
        %498 = vmatpush1.xpose.msra.mxu0 0.0
        %499 = vmatprep.subr.mxu0 0.0
        %500 = vmatpush1.xpose.msra.mxu0 0.0
        %501 = vmatprep.subr.mxu0 0.0
        %502 = vmatpush1.xpose.msra.mxu0 0.0
        %503 = vmatprep.subr.mxu0 0.0
        %504 = vmatpush1.xpose.msra.mxu0 0.0
        %505 = vmatprep.subr.mxu0 0.0
        %506 = vmatpush1.xpose.msra.mxu0 0.0
        %507 = vmatprep.subr.mxu0 0.0
        %508 = vmatpush1.xpose.msra.mxu0 0.0
        %509 = vmatprep.subr.mxu0 0.0
        %510 = vmatpush1.xpose.msra.mxu0 0.0
        %511 = vmatprep.subr.mxu0 0.0
        %512 = vmatpush1.xpose.msra.mxu0 0.0
        %513 = vmatprep.subr.mxu0 0.0
        %514 = vmatpush1.xpose.msra.mxu0 0.0
        %515 = vmatprep.mubr.f32.mxu0 0.0
        %516 = vmatmul.mubr.f32.gmra.mrb[0].mxu0 %v447
        %v517 = vpop.f32.mrb[0].mxu0
        %v518 = vadd.f32 0.0, %v517
        %v519 = vpop.f32.mrb[0].mxu0
        %520 = vdwg.mxu0
        %v521 = vsel %vm357, %v518, -inf
        %522 = vmax.xlane.f32.xlu0 %v521
        %v523 = vpop.xlane.xlu0 %522
        %v524 = vsub.f32 %v518, %v523
        %v525 = vmul.f32 %v524, 1.442695
        %v526 = vpow.pop %v525
        %v527 = vsel %vm357, %v526, 0.0
        %528 = vadd.xlane.f32.xlu0 %v527
        %v529 = vpop.xlane.xlu0 %528
        %v530 = vrcp.pop %v529
        %v531 = vmul.f32 %v526, %v530
        %533 = vrot.lane.b32.xlu0 %v275, 112
        %v534 = vpop.permute.xlu0 %533
        %v537 = vsel %vm357, %v531, 0
        %539 = vmatprep.subr.mxu0 0.0
        %540 = vmatpush1.msra.mxu0 %v534
        %541 = vmatprep.subr.mxu0 0.0
        %542 = vmatpush1.msra.mxu0 0.0
        %543 = vmatprep.subr.mxu0 0.0
        %544 = vmatpush1.msra.mxu0 0.0
        %545 = vmatprep.subr.mxu0 0.0
        %546 = vmatpush1.msra.mxu0 0.0
        %547 = vmatprep.subr.mxu0 0.0
        %548 = vmatpush1.msra.mxu0 0.0
        %549 = vmatprep.subr.mxu0 0.0
        %550 = vmatpush1.msra.mxu0 0.0
        %551 = vmatprep.subr.mxu0 0.0
        %552 = vmatpush1.msra.mxu0 0.0
        %553 = vmatprep.subr.mxu0 0.0
        %554 = vmatpush1.msra.mxu0 0.0
        %555 = vmatprep.subr.mxu0 0.0
        %556 = vmatpush1.msra.mxu0 0.0
        %557 = vmatprep.subr.mxu0 0.0
        %558 = vmatpush1.msra.mxu0 0.0
        %559 = vmatprep.subr.mxu0 0.0
        %560 = vmatpush1.msra.mxu0 0.0
        %561 = vmatprep.subr.mxu0 0.0
        %562 = vmatpush1.msra.mxu0 0.0
        %563 = vmatprep.subr.mxu0 0.0
        %564 = vmatpush1.msra.mxu0 0.0
        %565 = vmatprep.subr.mxu0 0.0
        %566 = vmatpush1.msra.mxu0 0.0
        %567 = vmatprep.subr.mxu0 0.0
        %568 = vmatpush1.msra.mxu0 0.0
        %569 = vmatprep.subr.mxu0 0.0
        %570 = vmatpush1.msra.mxu0 0.0
        %571 = vmatprep.subr.mxu0 0.0
        %572 = vmatpush1.msra.mxu0 0.0
        %573 = vmatprep.subr.mxu0 0.0
        %574 = vmatpush1.msra.mxu0 0.0
        %575 = vmatprep.subr.mxu0 0.0
        %576 = vmatpush1.msra.mxu0 0.0
        %577 = vmatprep.subr.mxu0 0.0
        %578 = vmatpush1.msra.mxu0 0.0
        %579 = vmatprep.subr.mxu0 0.0
        %580 = vmatpush1.msra.mxu0 0.0
        %581 = vmatprep.subr.mxu0 0.0
        %582 = vmatpush1.msra.mxu0 0.0
        %583 = vmatprep.subr.mxu0 0.0
        %584 = vmatpush1.msra.mxu0 0.0
        %585 = vmatprep.subr.mxu0 0.0
        %586 = vmatpush1.msra.mxu0 0.0
        %587 = vmatprep.subr.mxu0 0.0
        %588 = vmatpush1.msra.mxu0 0.0
        %589 = vmatprep.subr.mxu0 0.0
        %590 = vmatpush1.msra.mxu0 0.0
        %591 = vmatprep.subr.mxu0 0.0
        %592 = vmatpush1.msra.mxu0 0.0
        %593 = vmatprep.subr.mxu0 0.0
        %594 = vmatpush1.msra.mxu0 0.0
        %595 = vmatprep.subr.mxu0 0.0
        %596 = vmatpush1.msra.mxu0 0.0
        %597 = vmatprep.subr.mxu0 0.0
        %598 = vmatpush1.msra.mxu0 0.0
        %599 = vmatprep.subr.mxu0 0.0
        %600 = vmatpush1.msra.mxu0 0.0
        %601 = vmatprep.subr.mxu0 0.0
        %602 = vmatpush1.msra.mxu0 0.0
        %603 = vmatprep.mubr.f32.mxu0 0.0
        %604 = vmatmul.mubr.f32.gmra.mrb[0].mxu0 %v537
        %v605 = vpop.f32.mrb[0].mxu0
        %v606 = vadd.f32 0.0, %v605
        %v607 = vpop.f32.mrb[0].mxu0
        %608 = vdwg.mxu0
        %610 = vrot.lane.b32.xlu0 %v606, 16
        %v611 = vpop.permute.xlu0 %610
        %vm613 = vcmask 261248
        %614 = vst.msk [vmem:[#allocation2] sm:$0xff] %vm613, %v611
        %615 = vrot.lane.b32.xlu0 %v277, 96
        %v616 = vpop.permute.xlu0 %615
        %617 = vrot.lane.b32.xlu0 %v273, 32
        %v618 = vpop.permute.xlu0 %617
        %v619 = vsel %vm281, %v616, 0
        %v621 = vsel %vm281, %v618, 0
        %623 = vmatprep.subr.mxu0 0.0
        %624 = vmatpush1.xpose.msra.mxu0 %v621
        %625 = vmatprep.subr.mxu0 0.0
        %626 = vmatpush1.xpose.msra.mxu0 0.0
        %627 = vmatprep.subr.mxu0 0.0
        %628 = vmatpush1.xpose.msra.mxu0 0.0
        %629 = vmatprep.subr.mxu0 0.0
        %630 = vmatpush1.xpose.msra.mxu0 0.0
        %631 = vmatprep.subr.mxu0 0.0
        %632 = vmatpush1.xpose.msra.mxu0 0.0
        %633 = vmatprep.subr.mxu0 0.0
        %634 = vmatpush1.xpose.msra.mxu0 0.0
        %635 = vmatprep.subr.mxu0 0.0
        %636 = vmatpush1.xpose.msra.mxu0 0.0
        %637 = vmatprep.subr.mxu0 0.0
        %638 = vmatpush1.xpose.msra.mxu0 0.0
        %639 = vmatprep.subr.mxu0 0.0
        %640 = vmatpush1.xpose.msra.mxu0 0.0
        %641 = vmatprep.subr.mxu0 0.0
        %642 = vmatpush1.xpose.msra.mxu0 0.0
        %643 = vmatprep.subr.mxu0 0.0
        %644 = vmatpush1.xpose.msra.mxu0 0.0
        %645 = vmatprep.subr.mxu0 0.0
        %646 = vmatpush1.xpose.msra.mxu0 0.0
        %647 = vmatprep.subr.mxu0 0.0
        %648 = vmatpush1.xpose.msra.mxu0 0.0
        %649 = vmatprep.subr.mxu0 0.0
        %650 = vmatpush1.xpose.msra.mxu0 0.0
        %651 = vmatprep.subr.mxu0 0.0
        %652 = vmatpush1.xpose.msra.mxu0 0.0
        %653 = vmatprep.subr.mxu0 0.0
        %654 = vmatpush1.xpose.msra.mxu0 0.0
        %655 = vmatprep.subr.mxu0 0.0
        %656 = vmatpush1.xpose.msra.mxu0 0.0
        %657 = vmatprep.subr.mxu0 0.0
        %658 = vmatpush1.xpose.msra.mxu0 0.0
        %659 = vmatprep.subr.mxu0 0.0
        %660 = vmatpush1.xpose.msra.mxu0 0.0
        %661 = vmatprep.subr.mxu0 0.0
        %662 = vmatpush1.xpose.msra.mxu0 0.0
        %663 = vmatprep.subr.mxu0 0.0
        %664 = vmatpush1.xpose.msra.mxu0 0.0
        %665 = vmatprep.subr.mxu0 0.0
        %666 = vmatpush1.xpose.msra.mxu0 0.0
        %667 = vmatprep.subr.mxu0 0.0
        %668 = vmatpush1.xpose.msra.mxu0 0.0
        %669 = vmatprep.subr.mxu0 0.0
        %670 = vmatpush1.xpose.msra.mxu0 0.0
        %671 = vmatprep.subr.mxu0 0.0
        %672 = vmatpush1.xpose.msra.mxu0 0.0
        %673 = vmatprep.subr.mxu0 0.0
        %674 = vmatpush1.xpose.msra.mxu0 0.0
        %675 = vmatprep.subr.mxu0 0.0
        %676 = vmatpush1.xpose.msra.mxu0 0.0
        %677 = vmatprep.subr.mxu0 0.0
        %678 = vmatpush1.xpose.msra.mxu0 0.0
        %679 = vmatprep.subr.mxu0 0.0
        %680 = vmatpush1.xpose.msra.mxu0 0.0
        %681 = vmatprep.subr.mxu0 0.0
        %682 = vmatpush1.xpose.msra.mxu0 0.0
        %683 = vmatprep.subr.mxu0 0.0
        %684 = vmatpush1.xpose.msra.mxu0 0.0
        %685 = vmatprep.subr.mxu0 0.0
        %686 = vmatpush1.xpose.msra.mxu0 0.0
        %687 = vmatprep.mubr.f32.mxu0 0.0
        %688 = vmatmul.mubr.f32.gmra.mrb[0].mxu0 %v619
        %v689 = vpop.f32.mrb[0].mxu0
        %v690 = vadd.f32 0.0, %v689
        %v691 = vpop.f32.mrb[0].mxu0
        %692 = vdwg.mxu0
        %v693 = vsel %vm357, %v690, -inf
        %694 = vmax.xlane.f32.xlu0 %v693
        %v695 = vpop.xlane.xlu0 %694
        %v696 = vsub.f32 %v690, %v695
        %v697 = vmul.f32 %v696, 1.442695
        %v698 = vpow.pop %v697
        %v699 = vsel %vm357, %v698, 0.0
        %700 = vadd.xlane.f32.xlu0 %v699
        %v701 = vpop.xlane.xlu0 %700
        %v702 = vrcp.pop %v701
        %v703 = vmul.f32 %v698, %v702
        %704 = vrot.lane.b32.xlu0 %v275, 96
        %v705 = vpop.permute.xlu0 %704
        %v708 = vsel %vm357, %v703, 0
        %710 = vmatprep.subr.mxu0 0.0
        %711 = vmatpush1.msra.mxu0 %v705
        %712 = vmatprep.subr.mxu0 0.0
        %713 = vmatpush1.msra.mxu0 0.0
        %714 = vmatprep.subr.mxu0 0.0
        %715 = vmatpush1.msra.mxu0 0.0
        %716 = vmatprep.subr.mxu0 0.0
        %717 = vmatpush1.msra.mxu0 0.0
        %718 = vmatprep.subr.mxu0 0.0
        %719 = vmatpush1.msra.mxu0 0.0
        %720 = vmatprep.subr.mxu0 0.0
        %721 = vmatpush1.msra.mxu0 0.0
        %722 = vmatprep.subr.mxu0 0.0
        %723 = vmatpush1.msra.mxu0 0.0
        %724 = vmatprep.subr.mxu0 0.0
        %725 = vmatpush1.msra.mxu0 0.0
        %726 = vmatprep.subr.mxu0 0.0
        %727 = vmatpush1.msra.mxu0 0.0
        %728 = vmatprep.subr.mxu0 0.0
        %729 = vmatpush1.msra.mxu0 0.0
        %730 = vmatprep.subr.mxu0 0.0
        %731 = vmatpush1.msra.mxu0 0.0
        %732 = vmatprep.subr.mxu0 0.0
        %733 = vmatpush1.msra.mxu0 0.0
        %734 = vmatprep.subr.mxu0 0.0
        %735 = vmatpush1.msra.mxu0 0.0
        %736 = vmatprep.subr.mxu0 0.0
        %737 = vmatpush1.msra.mxu0 0.0
        %738 = vmatprep.subr.mxu0 0.0
        %739 = vmatpush1.msra.mxu0 0.0
        %740 = vmatprep.subr.mxu0 0.0
        %741 = vmatpush1.msra.mxu0 0.0
        %742 = vmatprep.subr.mxu0 0.0
        %743 = vmatpush1.msra.mxu0 0.0
        %744 = vmatprep.subr.mxu0 0.0
        %745 = vmatpush1.msra.mxu0 0.0
        %746 = vmatprep.subr.mxu0 0.0
        %747 = vmatpush1.msra.mxu0 0.0
        %748 = vmatprep.subr.mxu0 0.0
        %749 = vmatpush1.msra.mxu0 0.0
        %750 = vmatprep.subr.mxu0 0.0
        %751 = vmatpush1.msra.mxu0 0.0
        %752 = vmatprep.subr.mxu0 0.0
        %753 = vmatpush1.msra.mxu0 0.0
        %754 = vmatprep.subr.mxu0 0.0
        %755 = vmatpush1.msra.mxu0 0.0
        %756 = vmatprep.subr.mxu0 0.0
        %757 = vmatpush1.msra.mxu0 0.0
        %758 = vmatprep.subr.mxu0 0.0
        %759 = vmatpush1.msra.mxu0 0.0
        %760 = vmatprep.subr.mxu0 0.0
        %761 = vmatpush1.msra.mxu0 0.0
        %762 = vmatprep.subr.mxu0 0.0
        %763 = vmatpush1.msra.mxu0 0.0
        %764 = vmatprep.subr.mxu0 0.0
        %765 = vmatpush1.msra.mxu0 0.0
        %766 = vmatprep.subr.mxu0 0.0
        %767 = vmatpush1.msra.mxu0 0.0
        %768 = vmatprep.subr.mxu0 0.0
        %769 = vmatpush1.msra.mxu0 0.0
        %770 = vmatprep.subr.mxu0 0.0
        %771 = vmatpush1.msra.mxu0 0.0
        %772 = vmatprep.subr.mxu0 0.0
        %773 = vmatpush1.msra.mxu0 0.0
        %774 = vmatprep.mubr.f32.mxu0 0.0
        %775 = vmatmul.mubr.f32.gmra.mrb[0].mxu0 %v708
        %v776 = vpop.f32.mrb[0].mxu0
        %v777 = vadd.f32 0.0, %v776
        %v778 = vpop.f32.mrb[0].mxu0
        %779 = vdwg.mxu0
        %781 = vrot.lane.b32.xlu0 %v777, 32
        %v782 = vpop.permute.xlu0 %781
        %vm784 = vcmask 392448
        %785 = vst.msk [vmem:[#allocation2] sm:$0xff] %vm784, %v782
        %786 = vrot.lane.b32.xlu0 %v277, 80
        %v787 = vpop.permute.xlu0 %786
        %788 = vrot.lane.b32.xlu0 %v273, 16
        %v789 = vpop.permute.xlu0 %788
        %v790 = vsel %vm281, %v787, 0
        %v792 = vsel %vm281, %v789, 0
        %794 = vmatprep.subr.mxu0 0.0
        %795 = vmatpush1.xpose.msra.mxu0 %v792
        %796 = vmatprep.subr.mxu0 0.0
        %797 = vmatpush1.xpose.msra.mxu0 0.0
        %798 = vmatprep.subr.mxu0 0.0
        %799 = vmatpush1.xpose.msra.mxu0 0.0
        %800 = vmatprep.subr.mxu0 0.0
        %801 = vmatpush1.xpose.msra.mxu0 0.0
        %802 = vmatprep.subr.mxu0 0.0
        %803 = vmatpush1.xpose.msra.mxu0 0.0
        %804 = vmatprep.subr.mxu0 0.0
        %805 = vmatpush1.xpose.msra.mxu0 0.0
        %806 = vmatprep.subr.mxu0 0.0
        %807 = vmatpush1.xpose.msra.mxu0 0.0
        %808 = vmatprep.subr.mxu0 0.0
        %809 = vmatpush1.xpose.msra.mxu0 0.0
        %810 = vmatprep.subr.mxu0 0.0
        %811 = vmatpush1.xpose.msra.mxu0 0.0
        %812 = vmatprep.subr.mxu0 0.0
        %813 = vmatpush1.xpose.msra.mxu0 0.0
        %814 = vmatprep.subr.mxu0 0.0
        %815 = vmatpush1.xpose.msra.mxu0 0.0
        %816 = vmatprep.subr.mxu0 0.0
        %817 = vmatpush1.xpose.msra.mxu0 0.0
        %818 = vmatprep.subr.mxu0 0.0
        %819 = vmatpush1.xpose.msra.mxu0 0.0
        %820 = vmatprep.subr.mxu0 0.0
        %821 = vmatpush1.xpose.msra.mxu0 0.0
        %822 = vmatprep.subr.mxu0 0.0
        %823 = vmatpush1.xpose.msra.mxu0 0.0
        %824 = vmatprep.subr.mxu0 0.0
        %825 = vmatpush1.xpose.msra.mxu0 0.0
        %826 = vmatprep.subr.mxu0 0.0
        %827 = vmatpush1.xpose.msra.mxu0 0.0
        %828 = vmatprep.subr.mxu0 0.0
        %829 = vmatpush1.xpose.msra.mxu0 0.0
        %830 = vmatprep.subr.mxu0 0.0
        %831 = vmatpush1.xpose.msra.mxu0 0.0
        %832 = vmatprep.subr.mxu0 0.0
        %833 = vmatpush1.xpose.msra.mxu0 0.0
        %834 = vmatprep.subr.mxu0 0.0
        %835 = vmatpush1.xpose.msra.mxu0 0.0
        %836 = vmatprep.subr.mxu0 0.0
        %837 = vmatpush1.xpose.msra.mxu0 0.0
        %838 = vmatprep.subr.mxu0 0.0
        %839 = vmatpush1.xpose.msra.mxu0 0.0
        %840 = vmatprep.subr.mxu0 0.0
        %841 = vmatpush1.xpose.msra.mxu0 0.0
        %842 = vmatprep.subr.mxu0 0.0
        %843 = vmatpush1.xpose.msra.mxu0 0.0
        %844 = vmatprep.subr.mxu0 0.0
        %845 = vmatpush1.xpose.msra.mxu0 0.0
        %846 = vmatprep.subr.mxu0 0.0
        %847 = vmatpush1.xpose.msra.mxu0 0.0
        %848 = vmatprep.subr.mxu0 0.0
        %849 = vmatpush1.xpose.msra.mxu0 0.0
        %850 = vmatprep.subr.mxu0 0.0
        %851 = vmatpush1.xpose.msra.mxu0 0.0
        %852 = vmatprep.subr.mxu0 0.0
        %853 = vmatpush1.xpose.msra.mxu0 0.0
        %854 = vmatprep.subr.mxu0 0.0
        %855 = vmatpush1.xpose.msra.mxu0 0.0
        %856 = vmatprep.subr.mxu0 0.0
        %857 = vmatpush1.xpose.msra.mxu0 0.0
        %858 = vmatprep.mubr.f32.mxu0 0.0
        %859 = vmatmul.mubr.f32.gmra.mrb[0].mxu0 %v790
        %v860 = vpop.f32.mrb[0].mxu0
        %v861 = vadd.f32 0.0, %v860
        %v862 = vpop.f32.mrb[0].mxu0
        %863 = vdwg.mxu0
        %v864 = vsel %vm357, %v861, -inf
        %865 = vmax.xlane.f32.xlu0 %v864
        %v866 = vpop.xlane.xlu0 %865
        %v867 = vsub.f32 %v861, %v866
        %v868 = vmul.f32 %v867, 1.442695
        %v869 = vpow.pop %v868
        %v870 = vsel %vm357, %v869, 0.0
        %871 = vadd.xlane.f32.xlu0 %v870
        %v872 = vpop.xlane.xlu0 %871
        %v873 = vrcp.pop %v872
        %v874 = vmul.f32 %v869, %v873
        %875 = vrot.lane.b32.xlu0 %v275, 80
        %v876 = vpop.permute.xlu0 %875
        %v879 = vsel %vm357, %v874, 0
        %881 = vmatprep.subr.mxu0 0.0
        %882 = vmatpush1.msra.mxu0 %v876
        %883 = vmatprep.subr.mxu0 0.0
        %884 = vmatpush1.msra.mxu0 0.0
        %885 = vmatprep.subr.mxu0 0.0
        %886 = vmatpush1.msra.mxu0 0.0
        %887 = vmatprep.subr.mxu0 0.0
        %888 = vmatpush1.msra.mxu0 0.0
        %889 = vmatprep.subr.mxu0 0.0
        %890 = vmatpush1.msra.mxu0 0.0
        %891 = vmatprep.subr.mxu0 0.0
        %892 = vmatpush1.msra.mxu0 0.0
        %893 = vmatprep.subr.mxu0 0.0
        %894 = vmatpush1.msra.mxu0 0.0
        %895 = vmatprep.subr.mxu0 0.0
        %896 = vmatpush1.msra.mxu0 0.0
        %897 = vmatprep.subr.mxu0 0.0
        %898 = vmatpush1.msra.mxu0 0.0
        %899 = vmatprep.subr.mxu0 0.0
        %900 = vmatpush1.msra.mxu0 0.0
        %901 = vmatprep.subr.mxu0 0.0
        %902 = vmatpush1.msra.mxu0 0.0
        %903 = vmatprep.subr.mxu0 0.0
        %904 = vmatpush1.msra.mxu0 0.0
        %905 = vmatprep.subr.mxu0 0.0
        %906 = vmatpush1.msra.mxu0 0.0
        %907 = vmatprep.subr.mxu0 0.0
        %908 = vmatpush1.msra.mxu0 0.0
        %909 = vmatprep.subr.mxu0 0.0
        %910 = vmatpush1.msra.mxu0 0.0
        %911 = vmatprep.subr.mxu0 0.0
        %912 = vmatpush1.msra.mxu0 0.0
        %913 = vmatprep.subr.mxu0 0.0
        %914 = vmatpush1.msra.mxu0 0.0
        %915 = vmatprep.subr.mxu0 0.0
        %916 = vmatpush1.msra.mxu0 0.0
        %917 = vmatprep.subr.mxu0 0.0
        %918 = vmatpush1.msra.mxu0 0.0
        %919 = vmatprep.subr.mxu0 0.0
        %920 = vmatpush1.msra.mxu0 0.0
        %921 = vmatprep.subr.mxu0 0.0
        %922 = vmatpush1.msra.mxu0 0.0
        %923 = vmatprep.subr.mxu0 0.0
        %924 = vmatpush1.msra.mxu0 0.0
        %925 = vmatprep.subr.mxu0 0.0
        %926 = vmatpush1.msra.mxu0 0.0
        %927 = vmatprep.subr.mxu0 0.0
        %928 = vmatpush1.msra.mxu0 0.0
        %929 = vmatprep.subr.mxu0 0.0
        %930 = vmatpush1.msra.mxu0 0.0
        %931 = vmatprep.subr.mxu0 0.0
        %932 = vmatpush1.msra.mxu0 0.0
        %933 = vmatprep.subr.mxu0 0.0
        %934 = vmatpush1.msra.mxu0 0.0
        %935 = vmatprep.subr.mxu0 0.0
        %936 = vmatpush1.msra.mxu0 0.0
        %937 = vmatprep.subr.mxu0 0.0
        %938 = vmatpush1.msra.mxu0 0.0
        %939 = vmatprep.subr.mxu0 0.0
        %940 = vmatpush1.msra.mxu0 0.0
        %941 = vmatprep.subr.mxu0 0.0
        %942 = vmatpush1.msra.mxu0 0.0
        %943 = vmatprep.subr.mxu0 0.0
        %944 = vmatpush1.msra.mxu0 0.0
        %945 = vmatprep.mubr.f32.mxu0 0.0
        %946 = vmatmul.mubr.f32.gmra.mrb[0].mxu0 %v879
        %v947 = vpop.f32.mrb[0].mxu0
        %v948 = vadd.f32 0.0, %v947
        %v949 = vpop.f32.mrb[0].mxu0
        %950 = vdwg.mxu0
        %952 = vrot.lane.b32.xlu0 %v948, 48
        %v953 = vpop.permute.xlu0 %952
        %vm955 = vcmask 523648
        %956 = vst.msk [vmem:[#allocation2] sm:$0xff] %vm955, %v953
        %v957 = vld [vmem:[#allocation2] sm:$0xff]
        %v958 = vld [vmem:[%s2] sm:$0xff]
        %v959 = vld [vmem:[%s2 + $0x8] sm:$0xff]
        %v960 = vld [vmem:[%s2 + $0x10] sm:$0xff]
        %v961 = vld [vmem:[%s2 + $0x18] sm:$0xff]
        %v962 = vld [vmem:[%s2 + $0x20] sm:$0xff]
        %v963 = vld [vmem:[%s2 + $0x28] sm:$0xff]
        %v964 = vld [vmem:[%s2 + $0x30] sm:$0xff]
        %v965 = vld [vmem:[%s2 + $0x38] sm:$0xff]
        %v966 = vld [vmem:[%s3] sm:$0x1]
        %v968 = vlaneseq
        %v969 = vshrl.u32 %v968, 7
        %v970 = vsub.s32 0, %v969
        %v971 = vrot.slane %v966, %v970
        %vm973 = vcmask 523264
        %v975 = vsel %vm973, %v957, 0
        %977 = vmatprep.subr.mxu0 0.0
        %978 = vmatpush1.msra.mxu0 %v958
        %979 = vmatprep.subr.mxu0 0.0
        %980 = vmatpush1.msra.mxu0 %v959
        %981 = vmatprep.subr.mxu0 0.0
        %982 = vmatpush1.msra.mxu0 %v960
        %983 = vmatprep.subr.mxu0 0.0
        %984 = vmatpush1.msra.mxu0 %v961
        %985 = vmatprep.subr.mxu0 0.0
        %986 = vmatpush1.msra.mxu0 %v962
        %987 = vmatprep.subr.mxu0 0.0
        %988 = vmatpush1.msra.mxu0 %v963
        %989 = vmatprep.subr.mxu0 0.0
        %990 = vmatpush1.msra.mxu0 %v964
        %991 = vmatprep.subr.mxu0 0.0
        %992 = vmatpush1.msra.mxu0 %v965
        %993 = vmatprep.subr.mxu0 0.0
        %994 = vmatpush1.msra.mxu0 0.0
        %995 = vmatprep.subr.mxu0 0.0
        %996 = vmatpush1.msra.mxu0 0.0
        %997 = vmatprep.subr.mxu0 0.0
        %998 = vmatpush1.msra.mxu0 0.0
        %999 = vmatprep.subr.mxu0 0.0
        %1000 = vmatpush1.msra.mxu0 0.0
        %1001 = vmatprep.subr.mxu0 0.0
        %1002 = vmatpush1.msra.mxu0 0.0
        %1003 = vmatprep.subr.mxu0 0.0
        %1004 = vmatpush1.msra.mxu0 0.0
        %1005 = vmatprep.subr.mxu0 0.0
        %1006 = vmatpush1.msra.mxu0 0.0
        %1007 = vmatprep.subr.mxu0 0.0
        %1008 = vmatpush1.msra.mxu0 0.0
        %1009 = vmatprep.subr.mxu0 0.0
        %1010 = vmatpush1.msra.mxu0 0.0
        %1011 = vmatprep.subr.mxu0 0.0
        %1012 = vmatpush1.msra.mxu0 0.0
        %1013 = vmatprep.subr.mxu0 0.0
        %1014 = vmatpush1.msra.mxu0 0.0
        %1015 = vmatprep.subr.mxu0 0.0
        %1016 = vmatpush1.msra.mxu0 0.0
        %1017 = vmatprep.subr.mxu0 0.0
        %1018 = vmatpush1.msra.mxu0 0.0
        %1019 = vmatprep.subr.mxu0 0.0
        %1020 = vmatpush1.msra.mxu0 0.0
        %1021 = vmatprep.subr.mxu0 0.0
        %1022 = vmatpush1.msra.mxu0 0.0
        %1023 = vmatprep.subr.mxu0 0.0
        %1024 = vmatpush1.msra.mxu0 0.0
        %1025 = vmatprep.subr.mxu0 0.0
        %1026 = vmatpush1.msra.mxu0 0.0
        %1027 = vmatprep.subr.mxu0 0.0
        %1028 = vmatpush1.msra.mxu0 0.0
        %1029 = vmatprep.subr.mxu0 0.0
        %1030 = vmatpush1.msra.mxu0 0.0
        %1031 = vmatprep.subr.mxu0 0.0
        %1032 = vmatpush1.msra.mxu0 0.0
        %1033 = vmatprep.subr.mxu0 0.0
        %1034 = vmatpush1.msra.mxu0 0.0
        %1035 = vmatprep.subr.mxu0 0.0
        %1036 = vmatpush1.msra.mxu0 0.0
        %1037 = vmatprep.subr.mxu0 0.0
        %1038 = vmatpush1.msra.mxu0 0.0
        %1039 = vmatprep.subr.mxu0 0.0
        %1040 = vmatpush1.msra.mxu0 0.0
        %1041 = vmatprep.mubr.f32.mxu0 0.0
        %1042 = vmatmul.mubr.f32.gmra.mrb[0].mxu0 %v975
        %v1043 = vpop.f32.mrb[0].mxu0
        %v1044 = vadd.f32 %v971, %v1043
        %v1045 = vpop.f32.mrb[0].mxu0
        %1046 = vdwg.mxu0
        %1047 = vst.msk [vmem:[%s188] sm:$0xff] %vm202, %v1044
        %s1048 = sand.u32 %s115, 1
        %s1049 = scalar_lea.sflag [#allocation4], %s1048
        %s1050 = sand.u32 %s115, 1
        %s1051 = smul.addr %s1050, 8
        %s1052 = scalar_lea.vmem [#allocation3], %s1051
        // Predicated region
        $region37: #{tpu_custom_call.1} parent=35 // pred_check
          %p1053 = pneg %p125
        $region38: #{tpu_custom_call.1} parent=35 // pred_check_branch
          %1055 = sbr.rel (%p1053) target = $region40
        $region39: #{tpu_custom_call.1} parent=35 // pred_region
          %s1057 = ssub.s32 128, 128
          %1058 = vsyncadd %s1049, %s1057
          %s1059 = smul.addr %s18, 128
          %s1060 = scalar_lea.hbm %s4, %s1059
          %s1062 = sshll.u32 %s1052, 4
          %s1063 = int_to_ptr.vmem [resolvable:$true] %s1062
          %1065 = dma.vmem_to_hbm [thread:$0]  %s1063, 128, %s1060, %s1049
        $region40: #{tpu_custom_call.1} parent=35 // pred_fallthru
          _
      $region36: #{tpu_custom_call.1} parent=5 // pred_fallthru
        _
      %p1066 = scmp.le.s32.totalorder 2, %s13
      // Predicated region
      $region41: #{tpu_custom_call.1} parent=5 // pred_check
        %p1067 = pneg %p1066
      $region42: #{tpu_custom_call.1} parent=5 // pred_check_branch
        %1069 = sbr.rel (%p1067) target = $region44
      $region43: #{tpu_custom_call.1} parent=5 // pred_region
        %s1070 = ssub.s32 %s13, 2
        // Predicated region
        $region45: #{tpu_custom_call.1} parent=43 // pred_check
          %p1071 = pneg %p131
        $region46: #{tpu_custom_call.1} parent=43 // pred_check_branch
          %1073 = sbr.rel (%p1071) target = $region48
        $region47: #{tpu_custom_call.1} parent=43 // pred_region
          %s1074 = sand.u32 %s116, 1
          %s1075 = scalar_lea.sflag [#allocation4], %s1074
          %s1076 = sand.u32 %s116, 1
          %s1077 = smul.addr %s1076, 8
          %s1078 = scalar_lea.vmem [#allocation3], %s1077
          %1079 = dma.done %s1075, 128
        $region48: #{tpu_custom_call.1} parent=43 // pred_fallthru
          _
      $region44: #{tpu_custom_call.1} parent=5 // pred_fallthru
        _
    $region6: #{tpu_custom_call.1} parent=1 // loop_footer
      %s17 = sadd.s32 1, %s13
    $region7: #{tpu_custom_call.1} parent=1 // loop_footer_branch
      %12 = sbr.rel target = $region3
    $region8: #{tpu_custom_call.1} parent=1 // loop_exit
      _
    %1080 = vsyncpa [#allocation4], 1
    %s1081 = scalar_lea.sflag [#allocation4], 1
    %1082 = vsyncpa %s1081, 1

// kernel: tpu_custom_call.1
$region0: #{tpu_custom_call.1}
  #allocation0 [shape = 'u32[]', space=smem, size = 0x4, offset = 0x4, fixed_abs, tag = 'smem constant byte address 0x4 - core index']
  #allocation1 [shape = 'u32[144,128]{1,0:T(1,128)}', space=vmem, size = 0x12000, scoped, tag = 'internal scratch']
  #allocation2 [shape = 'f32[8,64]{1,0:T(8,128)}', space=vmem, size = 0x1000, scoped, tag = 'scratch operand']
  %s0 = inlined_call_operand.vmem [shape: f32[2,8,32], index: 0, kind: input, shape index: {}]
  %s1 = inlined_call_operand.vmem [shape: f32[32,192], index: 1, kind: input, shape index: {}]
  %s2 = inlined_call_operand.vmem [shape: f32[64,32], index: 2, kind: input, shape index: {}]
  %s3 = inlined_call_operand.vmem [shape: f32[1,32], index: 3, kind: input, shape index: {}]
  %s4 = inlined_call_operand.hbm [shape: f32[2,8,32], index: 4, kind: output, shape index: {}]
  %s5 = sld [smem:[#allocation0]]
  $region49: #{tpu_custom_call.1} parent=0
    _
  %s7 = ssub.s32 1, %s5
  %s8 = scalar_select 0, %s7, %s5
  $region1: #{tpu_custom_call.1} parent=0
    #allocation3 [shape = 'u8[8192]{0}', space=vmem, size = 0x2000, scoped, tag = 'output window, operand 0']
    #allocation4 [shape = 's32[2]{0}', space=sflag, size = 0x8, scoped, tag = 'scoped memory for tpu_custom_call.1']
    %9 = vsyncpa [#allocation4], 0
    %s10 = scalar_lea.sflag [#allocation4], 1
    %11 = vsyncpa %s10, 0
    loop: start=0, step=1, limit=4
    $region2: #{tpu_custom_call.1} parent=1 // loop_pre_header
      _
    $region3: #{tpu_custom_call.1} parent=1 // loop_header
      %s13 = sphi 0, %s17
      %p14 = scmp.ge.s32.totalorder %s13, 4
      %s23 = sphi 0, %s25
      %s26 = sphi 0, %s23
      %s27 = sphi 0, %s26
      %s43 = sphi 0, %s27
      %s47 = sphi 0, %s47
      %s49 = sphi 0, %s47
      %s50 = sphi 0, %s49
      %s64 = sphi 0, %s50
      %s68 = sphi 0, %s68
      %s70 = sphi 0, %s68
      %s71 = sphi 0, %s70
      %s85 = sphi 0, %s71
      %s89 = sphi 0, %s89
      %s91 = sphi 0, %s89
      %s92 = sphi 0, %s91
      %s106 = sphi 0, %s92
      %s112 = sphi 0, %s114
      %s115 = sphi 0, %s112
      %s116 = sphi 0, %s115
      %s132 = sphi 0, %s116
    $region4: #{tpu_custom_call.1} parent=1 // loop_header_branch
      %16 = sbr.rel (%p14) target = $region8
    $region5: #{tpu_custom_call.1} parent=1 // loop_body
      %s18 = ssub.s32 %s13, 1
      %s19 = ssub.s32 %s13, 2
      %s20 = sadd.s32 %s13, 1
      %s21 = ssub.s32 %s13, %s20
      %p22 = scmp.eq.s32.totalorder %s21, 0
      %s24 = sadd.s32 %s23, 1
      %s25 = scalar_select %p22, %s23, %s24
      %p28 = pneg %p22
      %p29 = scmp.eq.s32.totalorder %s13, 1
      %p30 = por %p28, %p29
      %p31 = scmp.ne.s32.totalorder %s23, %s26
      %p32 = scmp.eq.s32.totalorder %s13, 0
      %p33 = por %p31, %p32
      %p34 = scmp.ne.s32.totalorder %s23, %s26
      %p35 = scmp.eq.s32.totalorder %s18, 1
      %p36 = por %p34, %p35
      %p37 = scmp.ne.s32.totalorder %s26, %s27
      %p38 = scmp.eq.s32.totalorder %s18, 0
      %p39 = por %p37, %p38
      %p40 = scmp.ne.s32.totalorder %s26, %s27
      %p41 = scmp.eq.s32.totalorder %s19, 1
      %p42 = por %p40, %p41
      %p44 = scmp.ne.s32.totalorder %s27, %s43
      %p45 = scmp.eq.s32.totalorder %s19, 0
      %p46 = por %p44, %p45
      %s48 = sadd.s32 %s47, 1
      %p51 = scmp.eq.s32.totalorder %s13, 1
      %p52 = scmp.ne.s32.totalorder %s47, %s49
      %p53 = scmp.eq.s32.totalorder %s13, 0
      %p54 = por %p52, %p53
      %p55 = scmp.ne.s32.totalorder %s47, %s49
      %p56 = scmp.eq.s32.totalorder %s18, 1
      %p57 = por %p55, %p56
      %p58 = scmp.ne.s32.totalorder %s49, %s50
      %p59 = scmp.eq.s32.totalorder %s18, 0
      %p60 = por %p58, %p59
      %p61 = scmp.ne.s32.totalorder %s49, %s50
      %p62 = scmp.eq.s32.totalorder %s19, 1
      %p63 = por %p61, %p62
      %p65 = scmp.ne.s32.totalorder %s50, %s64
      %p66 = scmp.eq.s32.totalorder %s19, 0
      %p67 = por %p65, %p66
      %s69 = sadd.s32 %s68, 1
      %p72 = scmp.eq.s32.totalorder %s13, 1
      %p73 = scmp.ne.s32.totalorder %s68, %s70
      %p74 = scmp.eq.s32.totalorder %s13, 0
      %p75 = por %p73, %p74
      %p76 = scmp.ne.s32.totalorder %s68, %s70
      %p77 = scmp.eq.s32.totalorder %s18, 1
      %p78 = por %p76, %p77
      %p79 = scmp.ne.s32.totalorder %s70, %s71
      %p80 = scmp.eq.s32.totalorder %s18, 0
      %p81 = por %p79, %p80
      %p82 = scmp.ne.s32.totalorder %s70, %s71
      %p83 = scmp.eq.s32.totalorder %s19, 1
      %p84 = por %p82, %p83
      %p86 = scmp.ne.s32.totalorder %s71, %s85
      %p87 = scmp.eq.s32.totalorder %s19, 0
      %p88 = por %p86, %p87
      %s90 = sadd.s32 %s89, 1
      %p93 = scmp.eq.s32.totalorder %s13, 1
      %p94 = scmp.ne.s32.totalorder %s89, %s91
      %p95 = scmp.eq.s32.totalorder %s13, 0
      %p96 = por %p94, %p95
      %p97 = scmp.ne.s32.totalorder %s89, %s91
      %p98 = scmp.eq.s32.totalorder %s18, 1
      %p99 = por %p97, %p98
      %p100 = scmp.ne.s32.totalorder %s91, %s92
      %p101 = scmp.eq.s32.totalorder %s18, 0
      %p102 = por %p100, %p101
      %p103 = scmp.ne.s32.totalorder %s91, %s92
      %p104 = scmp.eq.s32.totalorder %s19, 1
      %p105 = por %p103, %p104
      %p107 = scmp.ne.s32.totalorder %s92, %s106
      %p108 = scmp.eq.s32.totalorder %s19, 0
      %p109 = por %p107, %p108
      %s110 = ssub.s32 %s13, %s20
      %p111 = scmp.eq.s32.totalorder %s110, 0
      %s113 = sadd.s32 %s112, 1
      %s114 = scalar_select %p111, %s112, %s113
      %p117 = pneg %p111
      %p118 = scmp.eq.s32.totalorder %s13, 1
      %p119 = por %p117, %p118
      %p120 = scmp.ne.s32.totalorder %s112, %s115
      %p121 = scmp.eq.s32.totalorder %s13, 0
      %p122 = por %p120, %p121
      %p123 = scmp.ne.s32.totalorder %s112, %s115
      %p124 = scmp.eq.s32.totalorder %s18, 1
      %p125 = por %p123, %p124
      %p126 = scmp.ne.s32.totalorder %s115, %s116
      %p127 = scmp.eq.s32.totalorder %s18, 0
      %p128 = por %p126, %p127
      %p129 = scmp.ne.s32.totalorder %s115, %s116
      %p130 = scmp.eq.s32.totalorder %s19, 1
      %p131 = por %p129, %p130
      %p133 = scmp.ne.s32.totalorder %s116, %s132
      %p134 = scmp.eq.s32.totalorder %s19, 0
      %p135 = por %p133, %p134
      %p136 = scmp.le.s32.totalorder 1, %s13
      %p137 = scmp.lt.s32.totalorder %s13, 3
      %p138 = pnand %p136, %p137
      %p139 = pneg %p138
      // Predicated region
      $region9: #{tpu_custom_call.1} parent=5 // pred_check
        _
      $region10: #{tpu_custom_call.1} parent=5 // pred_check_branch
        %141 = sbr.rel (%p138) target = $region12
      $region11: #{tpu_custom_call.1} parent=5 // pred_region
        %s142 = ssub.s32 %s13, 1
        // Predicated region
        $region13: #{tpu_custom_call.1} parent=11 // pred_check
          %p143 = pneg %p60
        $region14: #{tpu_custom_call.1} parent=11 // pred_check_branch
          %145 = sbr.rel (%p143) target = $region16
        $region15: #{tpu_custom_call.1} parent=11 // pred_region
          _
        $region16: #{tpu_custom_call.1} parent=11 // pred_fallthru
          _
        // Predicated region
        $region17: #{tpu_custom_call.1} parent=11 // pred_check
          %p146 = pneg %p81
        $region18: #{tpu_custom_call.1} parent=11 // pred_check_branch
          %148 = sbr.rel (%p146) target = $region20
        $region19: #{tpu_custom_call.1} parent=11 // pred_region
          _
        $region20: #{tpu_custom_call.1} parent=11 // pred_fallthru
          _
        // Predicated region
        $region21: #{tpu_custom_call.1} parent=11 // pred_check
          %p149 = pneg %p102
        $region22: #{tpu_custom_call.1} parent=11 // pred_check_branch
          %151 = sbr.rel (%p149) target = $region24
        $region23: #{tpu_custom_call.1} parent=11 // pred_region
          _
        $region24: #{tpu_custom_call.1} parent=11 // pred_fallthru
          _
      $region12: #{tpu_custom_call.1} parent=5 // pred_fallthru
        _
      %p152 = scmp.lt.s32.totalorder %s13, 2
      // Predicated region
      $region25: #{tpu_custom_call.1} parent=5 // pred_check
        %p153 = pneg %p152
      $region26: #{tpu_custom_call.1} parent=5 // pred_check_branch
        %155 = sbr.rel (%p153) target = $region28
      $region27: #{tpu_custom_call.1} parent=5 // pred_region
        // Predicated region
        $region29: #{tpu_custom_call.1} parent=27 // pred_check
          %p156 = pneg %p33
        $region30: #{tpu_custom_call.1} parent=27 // pred_check_branch
          %158 = sbr.rel (%p156) target = $region32
        $region31: #{tpu_custom_call.1} parent=27 // pred_region
          %p159 = scmp.lt.s32.totalorder %s13, 1
          %s160 = scalar_select %p159, %s13, 1
          %s161 = smul.addr %s160, 8
          %s162 = scalar_lea.vmem %s0, %s161
        $region32: #{tpu_custom_call.1} parent=27 // pred_fallthru
          _
      $region28: #{tpu_custom_call.1} parent=5 // pred_fallthru
        _
      %p163 = scmp.le.s32.totalorder 1, %s13
      %p164 = scmp.lt.s32.totalorder %s13, 3
      %p165 = pnand %p163, %p164
      %p166 = pneg %p165
      // Predicated region
      $region33: #{tpu_custom_call.1} parent=5 // pred_check
        _
      $region34: #{tpu_custom_call.1} parent=5 // pred_check_branch
        %168 = sbr.rel (%p165) target = $region36
      $region35: #{tpu_custom_call.1} parent=5 // pred_region
        %s169 = ssub.s32 %s13, 1
        %p170 = scmp.lt.s32.totalorder %s18, 1
        %s171 = scalar_select %p170, %s18, 1
        %s172 = smul.addr %s171, 8
        %s173 = scalar_lea.vmem %s0, %s172
        %p174 = pneg %p39
        %p175 = pneg %p36
        %p176 = pneg %p60
        %p177 = pneg %p57
        %p178 = pneg %p81
        %p179 = pneg %p78
        %p180 = pneg %p102
        %p181 = pneg %p99
        %p182 = pneg %p128
        %p183 = pneg %p125
        %s184 = sand.u32 %s115, 1
        %s185 = scalar_lea.sflag [#allocation4], %s184
        %s186 = sand.u32 %s115, 1
        %s187 = smul.addr %s186, 8
        %s188 = scalar_lea.vmem [#allocation3], %s187
        %p189 = scmp.lt.s32.totalorder %s18, 1
        %s190 = scalar_select %p189, %s18, 1
        %s191 = smul.addr %s190, 8
        %s192 = scalar_lea.vmem %s0, %s191
        %v193 = vld [vmem:[%s192] sm:$0xff]
        %v194 = vld [vmem:[%s1] sm:$0xff]
        %v195 = vld [vmem:[%s1 + $0x8] sm:$0xff]
        %v196 = vld [vmem:[%s1 + $0x10] sm:$0xff]
        %v197 = vld [vmem:[%s1 + $0x18] sm:$0xff]
        %v198 = vld [vmem:[%s1 + $0x20] sm:$0xff]
        %v199 = vld [vmem:[%s1 + $0x28] sm:$0xff]
        %v200 = vld [vmem:[%s1 + $0x30] sm:$0xff]
        %v201 = vld [vmem:[%s1 + $0x38] sm:$0xff]
        %vm202 = vcmask 261120
        %v204 = vsel %vm202, %v193, 0
        %206 = vmatprep.subr.mxu0 %v195
        %207 = vmatpush1.msra.mxu0 %v194
        %208 = vmatprep.subr.mxu0 %v197
        %209 = vmatpush1.msra.mxu0 %v196
        %210 = vmatprep.subr.mxu0 %v199
        %211 = vmatpush1.msra.mxu0 %v198
        %212 = vmatprep.subr.mxu0 %v201
        %213 = vmatpush1.msra.mxu0 %v200
        %214 = vmatprep.subr.mxu0 0.0
        %215 = vmatpush1.msra.mxu0 0.0
        %216 = vmatprep.subr.mxu0 0.0
        %217 = vmatpush1.msra.mxu0 0.0
        %218 = vmatprep.subr.mxu0 0.0
        %219 = vmatpush1.msra.mxu0 0.0
        %220 = vmatprep.subr.mxu0 0.0
        %221 = vmatpush1.msra.mxu0 0.0
        %222 = vmatprep.subr.mxu0 0.0
        %223 = vmatpush1.msra.mxu0 0.0
        %224 = vmatprep.subr.mxu0 0.0
        %225 = vmatpush1.msra.mxu0 0.0
        %226 = vmatprep.subr.mxu0 0.0
        %227 = vmatpush1.msra.mxu0 0.0
        %228 = vmatprep.subr.mxu0 0.0
        %229 = vmatpush1.msra.mxu0 0.0
        %230 = vmatprep.subr.mxu0 0.0
        %231 = vmatpush1.msra.mxu0 0.0
        %232 = vmatprep.subr.mxu0 0.0
        %233 = vmatpush1.msra.mxu0 0.0
        %234 = vmatprep.subr.mxu0 0.0
        %235 = vmatpush1.msra.mxu0 0.0
        %236 = vmatprep.subr.mxu0 0.0
        %237 = vmatpush1.msra.mxu0 0.0
        %238 = vmatprep.subr.mxu0 0.0
        %239 = vmatpush1.msra.mxu0 0.0
        %240 = vmatprep.subr.mxu0 0.0
        %241 = vmatpush1.msra.mxu0 0.0
        %242 = vmatprep.subr.mxu0 0.0
        %243 = vmatpush1.msra.mxu0 0.0
        %244 = vmatprep.subr.mxu0 0.0
        %245 = vmatpush1.msra.mxu0 0.0
        %246 = vmatprep.subr.mxu0 0.0
        %247 = vmatpush1.msra.mxu0 0.0
        %248 = vmatprep.subr.mxu0 0.0
        %249 = vmatpush1.msra.mxu0 0.0
        %250 = vmatprep.subr.mxu0 0.0
        %251 = vmatpush1.msra.mxu0 0.0
        %252 = vmatprep.subr.mxu0 0.0
        %253 = vmatpush1.msra.mxu0 0.0
        %254 = vmatprep.subr.mxu0 0.0
        %255 = vmatpush1.msra.mxu0 0.0
        %256 = vmatprep.subr.mxu0 0.0
        %257 = vmatpush1.msra.mxu0 0.0
        %258 = vmatprep.subr.mxu0 0.0
        %259 = vmatpush1.msra.mxu0 0.0
        %260 = vmatprep.subr.mxu0 0.0
        %261 = vmatpush1.msra.mxu0 0.0
        %262 = vmatprep.subr.mxu0 0.0
        %263 = vmatpush1.msra.mxu0 0.0
        %264 = vmatprep.subr.mxu0 0.0
        %265 = vmatpush1.msra.mxu0 0.0
        %266 = vmatprep.subr.mxu0 0.0
        %267 = vmatpush1.msra.mxu0 0.0
        %268 = vmatprep.subr.mxu0 0.0
        %269 = vmatpush1.msra.mxu0 0.0
        %270 = vmatprep.mubr.f32.mxu0 0.0
        %271 = vmatmul.mubr.f32.gmra.mrb[0].mxu0 %v204
        %v272 = vpop.f32.mrb[0].mxu0
        %v273 = vadd.f32 0.0, %v272
        %v274 = vpop.f32.mrb[0].mxu0
        %v275 = vadd.f32 0.0, %v274
        %276 = vdwg.mxu0
        %v277 = vmul.f32 %v273, 0.17677669
        %279 = vrot.lane.b32.xlu0 %v273, 64
        %v280 = vpop.permute.xlu0 %279
        %vm281 = vcmask 130048
        %v283 = vsel %vm281, %v277, 0
        %v285 = vsel %vm281, %v280, 0
        %287 = vmatprep.subr.mxu0 0.0
        %288 = vmatpush1.xpose.msra.mxu0 %v285
        %289 = vmatprep.subr.mxu0 0.0
        %290 = vmatpush1.xpose.msra.mxu0 0.0
        %291 = vmatprep.subr.mxu0 0.0
        %292 = vmatpush1.xpose.msra.mxu0 0.0
        %293 = vmatprep.subr.mxu0 0.0
        %294 = vmatpush1.xpose.msra.mxu0 0.0
        %295 = vmatprep.subr.mxu0 0.0
        %296 = vmatpush1.xpose.msra.mxu0 0.0
        %297 = vmatprep.subr.mxu0 0.0
        %298 = vmatpush1.xpose.msra.mxu0 0.0
        %299 = vmatprep.subr.mxu0 0.0
        %300 = vmatpush1.xpose.msra.mxu0 0.0
        %301 = vmatprep.subr.mxu0 0.0
        %302 = vmatpush1.xpose.msra.mxu0 0.0
        %303 = vmatprep.subr.mxu0 0.0
        %304 = vmatpush1.xpose.msra.mxu0 0.0
        %305 = vmatprep.subr.mxu0 0.0
        %306 = vmatpush1.xpose.msra.mxu0 0.0
        %307 = vmatprep.subr.mxu0 0.0
        %308 = vmatpush1.xpose.msra.mxu0 0.0
        %309 = vmatprep.subr.mxu0 0.0
        %310 = vmatpush1.xpose.msra.mxu0 0.0
        %311 = vmatprep.subr.mxu0 0.0
        %312 = vmatpush1.xpose.msra.mxu0 0.0
        %313 = vmatprep.subr.mxu0 0.0
        %314 = vmatpush1.xpose.msra.mxu0 0.0
        %315 = vmatprep.subr.mxu0 0.0
        %316 = vmatpush1.xpose.msra.mxu0 0.0
        %317 = vmatprep.subr.mxu0 0.0
        %318 = vmatpush1.xpose.msra.mxu0 0.0
        %319 = vmatprep.subr.mxu0 0.0
        %320 = vmatpush1.xpose.msra.mxu0 0.0
        %321 = vmatprep.subr.mxu0 0.0
        %322 = vmatpush1.xpose.msra.mxu0 0.0
        %323 = vmatprep.subr.mxu0 0.0
        %324 = vmatpush1.xpose.msra.mxu0 0.0
        %325 = vmatprep.subr.mxu0 0.0
        %326 = vmatpush1.xpose.msra.mxu0 0.0
        %327 = vmatprep.subr.mxu0 0.0
        %328 = vmatpush1.xpose.msra.mxu0 0.0
        %329 = vmatprep.subr.mxu0 0.0
        %330 = vmatpush1.xpose.msra.mxu0 0.0
        %331 = vmatprep.subr.mxu0 0.0
        %332 = vmatpush1.xpose.msra.mxu0 0.0
        %333 = vmatprep.subr.mxu0 0.0
        %334 = vmatpush1.xpose.msra.mxu0 0.0
        %335 = vmatprep.subr.mxu0 0.0
        %336 = vmatpush1.xpose.msra.mxu0 0.0
        %337 = vmatprep.subr.mxu0 0.0
        %338 = vmatpush1.xpose.msra.mxu0 0.0
        %339 = vmatprep.subr.mxu0 0.0
        %340 = vmatpush1.xpose.msra.mxu0 0.0
        %341 = vmatprep.subr.mxu0 0.0
        %342 = vmatpush1.xpose.msra.mxu0 0.0
        %343 = vmatprep.subr.mxu0 0.0
        %344 = vmatpush1.xpose.msra.mxu0 0.0
        %345 = vmatprep.subr.mxu0 0.0
        %346 = vmatpush1.xpose.msra.mxu0 0.0
        %347 = vmatprep.subr.mxu0 0.0
        %348 = vmatpush1.xpose.msra.mxu0 0.0
        %349 = vmatprep.subr.mxu0 0.0
        %350 = vmatpush1.xpose.msra.mxu0 0.0
        %351 = vmatprep.mubr.f32.mxu0 0.0
        %352 = vmatmul.mubr.f32.gmra.mrb[0].mxu0 %v283
        %v353 = vpop.f32.mrb[0].mxu0
        %v354 = vadd.f32 0.0, %v353
        %v355 = vpop.f32.mrb[0].mxu0
        %356 = vdwg.mxu0
        %vm357 = vcmask 64512
        %v358 = vsel %vm357, %v354, -inf
        %359 = vmax.xlane.f32.xlu0 %v358
        %v360 = vpop.xlane.xlu0 %359
        %v361 = vsub.f32 %v354, %v360
        %v362 = vmul.f32 %v361, 1.442695
        %v363 = vpow.pop %v362
        %v364 = vsel %vm357, %v363, 0.0
        %365 = vadd.xlane.f32.xlu0 %v364
        %v366 = vpop.xlane.xlu0 %365
        %v367 = vrcp.pop %v366
        %v368 = vmul.f32 %v363, %v367
        %v370 = vsel %vm357, %v368, 0
        %372 = vmatprep.subr.mxu0 0.0
        %373 = vmatpush1.msra.mxu0 %v275
        %374 = vmatprep.subr.mxu0 0.0
        %375 = vmatpush1.msra.mxu0 0.0
        %376 = vmatprep.subr.mxu0 0.0
        %377 = vmatpush1.msra.mxu0 0.0
        %378 = vmatprep.subr.mxu0 0.0
        %379 = vmatpush1.msra.mxu0 0.0
        %380 = vmatprep.subr.mxu0 0.0
        %381 = vmatpush1.msra.mxu0 0.0
        %382 = vmatprep.subr.mxu0 0.0
        %383 = vmatpush1.msra.mxu0 0.0
        %384 = vmatprep.subr.mxu0 0.0
        %385 = vmatpush1.msra.mxu0 0.0
        %386 = vmatprep.subr.mxu0 0.0
        %387 = vmatpush1.msra.mxu0 0.0
        %388 = vmatprep.subr.mxu0 0.0
        %389 = vmatpush1.msra.mxu0 0.0
        %390 = vmatprep.subr.mxu0 0.0
        %391 = vmatpush1.msra.mxu0 0.0
        %392 = vmatprep.subr.mxu0 0.0
        %393 = vmatpush1.msra.mxu0 0.0
        %394 = vmatprep.subr.mxu0 0.0
        %395 = vmatpush1.msra.mxu0 0.0
        %396 = vmatprep.subr.mxu0 0.0
        %397 = vmatpush1.msra.mxu0 0.0
        %398 = vmatprep.subr.mxu0 0.0
        %399 = vmatpush1.msra.mxu0 0.0
        %400 = vmatprep.subr.mxu0 0.0
        %401 = vmatpush1.msra.mxu0 0.0
        %402 = vmatprep.subr.mxu0 0.0
        %403 = vmatpush1.msra.mxu0 0.0
        %404 = vmatprep.subr.mxu0 0.0
        %405 = vmatpush1.msra.mxu0 0.0
        %406 = vmatprep.subr.mxu0 0.0
        %407 = vmatpush1.msra.mxu0 0.0
        %408 = vmatprep.subr.mxu0 0.0
        %409 = vmatpush1.msra.mxu0 0.0
        %410 = vmatprep.subr.mxu0 0.0
        %411 = vmatpush1.msra.mxu0 0.0
        %412 = vmatprep.subr.mxu0 0.0
        %413 = vmatpush1.msra.mxu0 0.0
        %414 = vmatprep.subr.mxu0 0.0
        %415 = vmatpush1.msra.mxu0 0.0
        %416 = vmatprep.subr.mxu0 0.0
        %417 = vmatpush1.msra.mxu0 0.0
        %418 = vmatprep.subr.mxu0 0.0
        %419 = vmatpush1.msra.mxu0 0.0
        %420 = vmatprep.subr.mxu0 0.0
        %421 = vmatpush1.msra.mxu0 0.0
        %422 = vmatprep.subr.mxu0 0.0
        %423 = vmatpush1.msra.mxu0 0.0
        %424 = vmatprep.subr.mxu0 0.0
        %425 = vmatpush1.msra.mxu0 0.0
        %426 = vmatprep.subr.mxu0 0.0
        %427 = vmatpush1.msra.mxu0 0.0
        %428 = vmatprep.subr.mxu0 0.0
        %429 = vmatpush1.msra.mxu0 0.0
        %430 = vmatprep.subr.mxu0 0.0
        %431 = vmatpush1.msra.mxu0 0.0
        %432 = vmatprep.subr.mxu0 0.0
        %433 = vmatpush1.msra.mxu0 0.0
        %434 = vmatprep.subr.mxu0 0.0
        %435 = vmatpush1.msra.mxu0 0.0
        %436 = vmatprep.mubr.f32.mxu0 0.0
        %437 = vmatmul.mubr.f32.gmra.mrb[0].mxu0 %v370
        %v438 = vpop.f32.mrb[0].mxu0
        %v439 = vadd.f32 0.0, %v438
        %v440 = vpop.f32.mrb[0].mxu0
        %441 = vdwg.mxu0
        %442 = vst.msk [vmem:[#allocation2] sm:$0xff] %vm281, %v439
        %443 = vrot.lane.b32.xlu0 %v277, 112
        %v444 = vpop.permute.xlu0 %443
        %445 = vrot.lane.b32.xlu0 %v273, 48
        %v446 = vpop.permute.xlu0 %445
        %v447 = vsel %vm281, %v444, 0
        %v449 = vsel %vm281, %v446, 0
        %451 = vmatprep.subr.mxu0 0.0
        %452 = vmatpush1.xpose.msra.mxu0 %v449
        %453 = vmatprep.subr.mxu0 0.0
        %454 = vmatpush1.xpose.msra.mxu0 0.0
        %455 = vmatprep.subr.mxu0 0.0
        %456 = vmatpush1.xpose.msra.mxu0 0.0
        %457 = vmatprep.subr.mxu0 0.0
        %458 = vmatpush1.xpose.msra.mxu0 0.0
        %459 = vmatprep.subr.mxu0 0.0
        %460 = vmatpush1.xpose.msra.mxu0 0.0
        %461 = vmatprep.subr.mxu0 0.0
        %462 = vmatpush1.xpose.msra.mxu0 0.0
        %463 = vmatprep.subr.mxu0 0.0
        %464 = vmatpush1.xpose.msra.mxu0 0.0
        %465 = vmatprep.subr.mxu0 0.0
        %466 = vmatpush1.xpose.msra.mxu0 0.0
        %467 = vmatprep.subr.mxu0 0.0
        %468 = vmatpush1.xpose.msra.mxu0 0.0
        %469 = vmatprep.subr.mxu0 0.0
        %470 = vmatpush1.xpose.msra.mxu0 0.0
        %471 = vmatprep.subr.mxu0 0.0
        %472 = vmatpush1.xpose.msra.mxu0 0.0
        %473 = vmatprep.subr.mxu0 0.0
        %474 = vmatpush1.xpose.msra.mxu0 0.0
        %475 = vmatprep.subr.mxu0 0.0
        %476 = vmatpush1.xpose.msra.mxu0 0.0
        %477 = vmatprep.subr.mxu0 0.0
        %478 = vmatpush1.xpose.msra.mxu0 0.0
        %479 = vmatprep.subr.mxu0 0.0
        %480 = vmatpush1.xpose.msra.mxu0 0.0
        %481 = vmatprep.subr.mxu0 0.0
        %482 = vmatpush1.xpose.msra.mxu0 0.0
        %483 = vmatprep.subr.mxu0 0.0
        %484 = vmatpush1.xpose.msra.mxu0 0.0
        %485 = vmatprep.subr.mxu0 0.0
        %486 = vmatpush1.xpose.msra.mxu0 0.0
        %487 = vmatprep.subr.mxu0 0.0
        %488 = vmatpush1.xpose.msra.mxu0 0.0
        %489 = vmatprep.subr.mxu0 0.0
        %490 = vmatpush1.xpose.msra.mxu0 0.0
        %491 = vmatprep.subr.mxu0 0.0
        %492 = vmatpush1.xpose.msra.mxu0 0.0
        %493 = vmatprep.subr.mxu0 0.0
        %494 = vmatpush1.xpose.msra.mxu0 0.0
        %495 = vmatprep.subr.mxu0 0.0
        %496 = vmatpush1.xpose.msra.mxu0 0.0
        %497 = vmatprep.subr.mxu0 0.0
        %498 = vmatpush1.xpose.msra.mxu0 0.0
        %499 = vmatprep.subr.mxu0 0.0
        %500 = vmatpush1.xpose.msra.mxu0 0.0
        %501 = vmatprep.subr.mxu0 0.0
        %502 = vmatpush1.xpose.msra.mxu0 0.0
        %503 = vmatprep.subr.mxu0 0.0
        %504 = vmatpush1.xpose.msra.mxu0 0.0
        %505 = vmatprep.subr.mxu0 0.0
        %506 = vmatpush1.xpose.msra.mxu0 0.0
        %507 = vmatprep.subr.mxu0 0.0
        %508 = vmatpush1.xpose.msra.mxu0 0.0
        %509 = vmatprep.subr.mxu0 0.0
        %510 = vmatpush1.xpose.msra.mxu0 0.0
        %511 = vmatprep.subr.mxu0 0.0
        %512 = vmatpush1.xpose.msra.mxu0 0.0
        %513 = vmatprep.subr.mxu0 0.0
        %514 = vmatpush1.xpose.msra.mxu0 0.0
        %515 = vmatprep.mubr.f32.mxu0 0.0
        %516 = vmatmul.mubr.f32.gmra.mrb[0].mxu0 %v447
        %v517 = vpop.f32.mrb[0].mxu0
        %v518 = vadd.f32 0.0, %v517
        %v519 = vpop.f32.mrb[0].mxu0
        %520 = vdwg.mxu0
        %v521 = vsel %vm357, %v518, -inf
        %522 = vmax.xlane.f32.xlu0 %v521
        %v523 = vpop.xlane.xlu0 %522
        %v524 = vsub.f32 %v518, %v523
        %v525 = vmul.f32 %v524, 1.442695
        %v526 = vpow.pop %v525
        %v527 = vsel %vm357, %v526, 0.0
        %528 = vadd.xlane.f32.xlu0 %v527
        %v529 = vpop.xlane.xlu0 %528
        %v530 = vrcp.pop %v529
        %v531 = vmul.f32 %v526, %v530
        %533 = vrot.lane.b32.xlu0 %v275, 112
        %v534 = vpop.permute.xlu0 %533
        %v537 = vsel %vm357, %v531, 0
        %539 = vmatprep.subr.mxu0 0.0
        %540 = vmatpush1.msra.mxu0 %v534
        %541 = vmatprep.subr.mxu0 0.0
        %542 = vmatpush1.msra.mxu0 0.0
        %543 = vmatprep.subr.mxu0 0.0
        %544 = vmatpush1.msra.mxu0 0.0
        %545 = vmatprep.subr.mxu0 0.0
        %546 = vmatpush1.msra.mxu0 0.0
        %547 = vmatprep.subr.mxu0 0.0
        %548 = vmatpush1.msra.mxu0 0.0
        %549 = vmatprep.subr.mxu0 0.0
        %550 = vmatpush1.msra.mxu0 0.0
        %551 = vmatprep.subr.mxu0 0.0
        %552 = vmatpush1.msra.mxu0 0.0
        %553 = vmatprep.subr.mxu0 0.0
        %554 = vmatpush1.msra.mxu0 0.0
        %555 = vmatprep.subr.mxu0 0.0
        %556 = vmatpush1.msra.mxu0 0.0
        %557 = vmatprep.subr.mxu0 0.0
        %558 = vmatpush1.msra.mxu0 0.0
        %559 = vmatprep.subr.mxu0 0.0
        %560 = vmatpush1.msra.mxu0 0.0
        %561 = vmatprep.subr.mxu0 0.0
        %562 = vmatpush1.msra.mxu0 0.0
        %563 = vmatprep.subr.mxu0 0.0
        %564 = vmatpush1.msra.mxu0 0.0
        %565 = vmatprep.subr.mxu0 0.0
        %566 = vmatpush1.msra.mxu0 0.0
        %567 = vmatprep.subr.mxu0 0.0
        %568 = vmatpush1.msra.mxu0 0.0
        %569 = vmatprep.subr.mxu0 0.0
        %570 = vmatpush1.msra.mxu0 0.0
        %571 = vmatprep.subr.mxu0 0.0
        %572 = vmatpush1.msra.mxu0 0.0
        %573 = vmatprep.subr.mxu0 0.0
        %574 = vmatpush1.msra.mxu0 0.0
        %575 = vmatprep.subr.mxu0 0.0
        %576 = vmatpush1.msra.mxu0 0.0
        %577 = vmatprep.subr.mxu0 0.0
        %578 = vmatpush1.msra.mxu0 0.0
        %579 = vmatprep.subr.mxu0 0.0
        %580 = vmatpush1.msra.mxu0 0.0
        %581 = vmatprep.subr.mxu0 0.0
        %582 = vmatpush1.msra.mxu0 0.0
        %583 = vmatprep.subr.mxu0 0.0
        %584 = vmatpush1.msra.mxu0 0.0
        %585 = vmatprep.subr.mxu0 0.0
        %586 = vmatpush1.msra.mxu0 0.0
        %587 = vmatprep.subr.mxu0 0.0
        %588 = vmatpush1.msra.mxu0 0.0
        %589 = vmatprep.subr.mxu0 0.0
        %590 = vmatpush1.msra.mxu0 0.0
        %591 = vmatprep.subr.mxu0 0.0
        %592 = vmatpush1.msra.mxu0 0.0
        %593 = vmatprep.subr.mxu0 0.0
        %594 = vmatpush1.msra.mxu0 0.0
        %595 = vmatprep.subr.mxu0 0.0
        %596 = vmatpush1.msra.mxu0 0.0
        %597 = vmatprep.subr.mxu0 0.0
        %598 = vmatpush1.msra.mxu0 0.0
        %599 = vmatprep.subr.mxu0 0.0
        %600 = vmatpush1.msra.mxu0 0.0
        %601 = vmatprep.subr.mxu0 0.0
        %602 = vmatpush1.msra.mxu0 0.0
        %603 = vmatprep.mubr.f32.mxu0 0.0
        %604 = vmatmul.mubr.f32.gmra.mrb[0].mxu0 %v537
        %v605 = vpop.f32.mrb[0].mxu0
        %v606 = vadd.f32 0.0, %v605
        %v607 = vpop.f32.mrb[0].mxu0
        %608 = vdwg.mxu0
        %610 = vrot.lane.b32.xlu0 %v606, 16
        %v611 = vpop.permute.xlu0 %610
        %vm613 = vcmask 261248
        %614 = vst.msk [vmem:[#allocation2] sm:$0xff] %vm613, %v611
        %615 = vrot.lane.b32.xlu0 %v277, 96
        %v616 = vpop.permute.xlu0 %615
        %617 = vrot.lane.b32.xlu0 %v273, 32
        %v618 = vpop.permute.xlu0 %617
        %v619 = vsel %vm281, %v616, 0
        %v621 = vsel %vm281, %v618, 0
        %623 = vmatprep.subr.mxu0 0.0
        %624 = vmatpush1.xpose.msra.mxu0 %v621
        %625 = vmatprep.subr.mxu0 0.0
        %626 = vmatpush1.xpose.msra.mxu0 0.0
        %627 = vmatprep.subr.mxu0 0.0
        %628 = vmatpush1.xpose.msra.mxu0 0.0
        %629 = vmatprep.subr.mxu0 0.0
        %630 = vmatpush1.xpose.msra.mxu0 0.0
        %631 = vmatprep.subr.mxu0 0.0
        %632 = vmatpush1.xpose.msra.mxu0 0.0
        %633 = vmatprep.subr.mxu0 0.0
        %634 = vmatpush1.xpose.msra.mxu0 0.0
        %635 = vmatprep.subr.mxu0 0.0
        %636 = vmatpush1.xpose.msra.mxu0 0.0
        %637 = vmatprep.subr.mxu0 0.0
        %638 = vmatpush1.xpose.msra.mxu0 0.0
        %639 = vmatprep.subr.mxu0 0.0
        %640 = vmatpush1.xpose.msra.mxu0 0.0
        %641 = vmatprep.subr.mxu0 0.0
        %642 = vmatpush1.xpose.msra.mxu0 0.0
        %643 = vmatprep.subr.mxu0 0.0
        %644 = vmatpush1.xpose.msra.mxu0 0.0
        %645 = vmatprep.subr.mxu0 0.0
        %646 = vmatpush1.xpose.msra.mxu0 0.0
        %647 = vmatprep.subr.mxu0 0.0
        %648 = vmatpush1.xpose.msra.mxu0 0.0
        %649 = vmatprep.subr.mxu0 0.0
        %650 = vmatpush1.xpose.msra.mxu0 0.0
        %651 = vmatprep.subr.mxu0 0.0
        %652 = vmatpush1.xpose.msra.mxu0 0.0
        %653 = vmatprep.subr.mxu0 0.0
        %654 = vmatpush1.xpose.msra.mxu0 0.0
        %655 = vmatprep.subr.mxu0 0.0
        %656 = vmatpush1.xpose.msra.mxu0 0.0
        %657 = vmatprep.subr.mxu0 0.0
        %658 = vmatpush1.xpose.msra.mxu0 0.0
        %659 = vmatprep.subr.mxu0 0.0
        %660 = vmatpush1.xpose.msra.mxu0 0.0
        %661 = vmatprep.subr.mxu0 0.0
        %662 = vmatpush1.xpose.msra.mxu0 0.0
        %663 = vmatprep.subr.mxu0 0.0
        %664 = vmatpush1.xpose.msra.mxu0 0.0
        %665 = vmatprep.subr.mxu0 0.0
        %666 = vmatpush1.xpose.msra.mxu0 0.0
        %667 = vmatprep.subr.mxu0 0.0
        %668 = vmatpush1.xpose.msra.mxu0 0.0
        %669 = vmatprep.subr.mxu0 0.0
        %670 = vmatpush1.xpose.msra.mxu0 0.0
        %671 = vmatprep.subr.mxu0 0.0
        %672 = vmatpush1.xpose.msra.mxu0 0.0
        %673 = vmatprep.subr.mxu0 0.0
        %674 = vmatpush1.xpose.msra.mxu0 0.0
        %675 = vmatprep.subr.mxu0 0.0
        %676 = vmatpush1.xpose.msra.mxu0 0.0
        %677 = vmatprep.subr.mxu0 0.0
        %678 = vmatpush1.xpose.msra.mxu0 0.0
        %679 = vmatprep.subr.mxu0 0.0
        %680 = vmatpush1.xpose.msra.mxu0 0.0
        %681 = vmatprep.subr.mxu0 0.0
        %682 = vmatpush1.xpose.msra.mxu0 0.0
        %683 = vmatprep.subr.mxu0 0.0
        %684 = vmatpush1.xpose.msra.mxu0 0.0
        %685 = vmatprep.subr.mxu0 0.0
        %686 = vmatpush1.xpose.msra.mxu0 0.0
        %687 = vmatprep.mubr.f32.mxu0 0.0
        %688 = vmatmul.mubr.f32.gmra.mrb[0].mxu0 %v619
        %v689 = vpop.f32.mrb[0].mxu0
        %v690 = vadd.f32 0.0, %v689
        %v691 = vpop.f32.mrb[0].mxu0
        %692 = vdwg.mxu0
        %v693 = vsel %vm357, %v690, -inf
        %694 = vmax.xlane.f32.xlu0 %v693
        %v695 = vpop.xlane.xlu0 %694
        %v696 = vsub.f32 %v690, %v695
        %v697 = vmul.f32 %v696, 1.442695
        %v698 = vpow.pop %v697
        %v699 = vsel %vm357, %v698, 0.0
        %700 = vadd.xlane.f32.xlu0 %v699
        %v701 = vpop.xlane.xlu0 %700
        %v702 = vrcp.pop %v701
        %v703 = vmul.f32 %v698, %v702
        %704 = vrot.lane.b32.xlu0 %v275, 96
        %v705 = vpop.permute.xlu0 %704
        %v708 = vsel %vm357, %v703, 0
        %710 = vmatprep.subr.mxu0 0.0
        %711 = vmatpush1.msra.mxu0 %v705
        %712 = vmatprep.subr.mxu0 0.0
        %713 = vmatpush1.msra.mxu0 0.0
        %714 = vmatprep.subr.mxu0 0.0
        %715 = vmatpush1.msra.mxu0 0.0
        %716 = vmatprep.subr.mxu0 0.0
        %717 = vmatpush1.msra.mxu0 0.0
        %718 = vmatprep.subr.mxu0 0.0
        %719 = vmatpush1.msra.mxu0 0.0
        %720 = vmatprep.subr.mxu0 0.0
        %721 = vmatpush1.msra.mxu0 0.0
        %722 = vmatprep.subr.mxu0 0.0
        %723 = vmatpush1.msra.mxu0 0.0
        %724 = vmatprep.subr.mxu0 0.0
        %725 = vmatpush1.msra.mxu0 0.0
        %726 = vmatprep.subr.mxu0 0.0
        %727 = vmatpush1.msra.mxu0 0.0
        %728 = vmatprep.subr.mxu0 0.0
        %729 = vmatpush1.msra.mxu0 0.0
        %730 = vmatprep.subr.mxu0 0.0
        %731 = vmatpush1.msra.mxu0 0.0
        %732 = vmatprep.subr.mxu0 0.0
        %733 = vmatpush1.msra.mxu0 0.0
        %734 = vmatprep.subr.mxu0 0.0
        %735 = vmatpush1.msra.mxu0 0.0
        %736 = vmatprep.subr.mxu0 0.0
        %737 = vmatpush1.msra.mxu0 0.0
        %738 = vmatprep.subr.mxu0 0.0
        %739 = vmatpush1.msra.mxu0 0.0
        %740 = vmatprep.subr.mxu0 0.0
        %741 = vmatpush1.msra.mxu0 0.0
        %742 = vmatprep.subr.mxu0 0.0
        %743 = vmatpush1.msra.mxu0 0.0
        %744 = vmatprep.subr.mxu0 0.0
        %745 = vmatpush1.msra.mxu0 0.0
        %746 = vmatprep.subr.mxu0 0.0
        %747 = vmatpush1.msra.mxu0 0.0
        %748 = vmatprep.subr.mxu0 0.0
        %749 = vmatpush1.msra.mxu0 0.0
        %750 = vmatprep.subr.mxu0 0.0
        %751 = vmatpush1.msra.mxu0 0.0
        %752 = vmatprep.subr.mxu0 0.0
        %753 = vmatpush1.msra.mxu0 0.0
        %754 = vmatprep.subr.mxu0 0.0
        %755 = vmatpush1.msra.mxu0 0.0
        %756 = vmatprep.subr.mxu0 0.0
        %757 = vmatpush1.msra.mxu0 0.0
        %758 = vmatprep.subr.mxu0 0.0
        %759 = vmatpush1.msra.mxu0 0.0
        %760 = vmatprep.subr.mxu0 0.0
        %761 = vmatpush1.msra.mxu0 0.0
        %762 = vmatprep.subr.mxu0 0.0
        %763 = vmatpush1.msra.mxu0 0.0
        %764 = vmatprep.subr.mxu0 0.0
        %765 = vmatpush1.msra.mxu0 0.0
        %766 = vmatprep.subr.mxu0 0.0
        %767 = vmatpush1.msra.mxu0 0.0
        %768 = vmatprep.subr.mxu0 0.0
        %769 = vmatpush1.msra.mxu0 0.0
        %770 = vmatprep.subr.mxu0 0.0
        %771 = vmatpush1.msra.mxu0 0.0
        %772 = vmatprep.subr.mxu0 0.0
        %773 = vmatpush1.msra.mxu0 0.0
        %774 = vmatprep.mubr.f32.mxu0 0.0
        %775 = vmatmul.mubr.f32.gmra.mrb[0].mxu0 %v708
        %v776 = vpop.f32.mrb[0].mxu0
        %v777 = vadd.f32 0.0, %v776
        %v778 = vpop.f32.mrb[0].mxu0
        %779 = vdwg.mxu0
        %781 = vrot.lane.b32.xlu0 %v777, 32
        %v782 = vpop.permute.xlu0 %781
        %vm784 = vcmask 392448
        %785 = vst.msk [vmem:[#allocation2] sm:$0xff] %vm784, %v782
        %786 = vrot.lane.b32.xlu0 %v277, 80
        %v787 = vpop.permute.xlu0 %786
        %788 = vrot.lane.b32.xlu0 %v273, 16
        %v789 = vpop.permute.xlu0 %788
        %v790 = vsel %vm281, %v787, 0
        %v792 = vsel %vm281, %v789, 0
        %794 = vmatprep.subr.mxu0 0.0
        %795 = vmatpush1.xpose.msra.mxu0 %v792
        %796 = vmatprep.subr.mxu0 0.0
        %797 = vmatpush1.xpose.msra.mxu0 0.0
        %798 = vmatprep.subr.mxu0 0.0
        %799 = vmatpush1.xpose.msra.mxu0 0.0
        %800 = vmatprep.subr.mxu0 0.0
        %801 = vmatpush1.xpose.msra.mxu0 0.0
        %802 = vmatprep.subr.mxu0 0.0
        %803 = vmatpush1.xpose.msra.mxu0 0.0
        %804 = vmatprep.subr.mxu0 0.0
        %805 = vmatpush1.xpose.msra.mxu0 0.0
        %806 = vmatprep.subr.mxu0 0.0
        %807 = vmatpush1.xpose.msra.mxu0 0.0
        %808 = vmatprep.subr.mxu0 0.0
        %809 = vmatpush1.xpose.msra.mxu0 0.0
        %810 = vmatprep.subr.mxu0 0.0
        %811 = vmatpush1.xpose.msra.mxu0 0.0
        %812 = vmatprep.subr.mxu0 0.0
        %813 = vmatpush1.xpose.msra.mxu0 0.0
        %814 = vmatprep.subr.mxu0 0.0
        %815 = vmatpush1.xpose.msra.mxu0 0.0
        %816 = vmatprep.subr.mxu0 0.0
        %817 = vmatpush1.xpose.msra.mxu0 0.0
        %818 = vmatprep.subr.mxu0 0.0
        %819 = vmatpush1.xpose.msra.mxu0 0.0
        %820 = vmatprep.subr.mxu0 0.0
        %821 = vmatpush1.xpose.msra.mxu0 0.0
        %822 = vmatprep.subr.mxu0 0.0
        %823 = vmatpush1.xpose.msra.mxu0 0.0
        %824 = vmatprep.subr.mxu0 0.0
        %825 = vmatpush1.xpose.msra.mxu0 0.0
        %826 = vmatprep.subr.mxu0 0.0
        %827 = vmatpush1.xpose.msra.mxu0 0.0
        %828 = vmatprep.subr.mxu0 0.0
        %829 = vmatpush1.xpose.msra.mxu0 0.0
        %830 = vmatprep.subr.mxu0 0.0
        %831 = vmatpush1.xpose.msra.mxu0 0.0
        %832 = vmatprep.subr.mxu0 0.0
        %833 = vmatpush1.xpose.msra.mxu0 0.0
        %834 = vmatprep.subr.mxu0 0.0
        %835 = vmatpush1.xpose.msra.mxu0 0.0
        %836 = vmatprep.subr.mxu0 0.0
        %837 = vmatpush1.xpose.msra.mxu0 0.0
        %838 = vmatprep.subr.mxu0 0.0
        %839 = vmatpush1.xpose.msra.mxu0 0.0
        %840 = vmatprep.subr.mxu0 0.0
        %841 = vmatpush1.xpose.msra.mxu0 0.0
        %842 = vmatprep.subr.mxu0 0.0
        %843 = vmatpush1.xpose.msra.mxu0 0.0
        %844 = vmatprep.subr.mxu0 0.0
        %845 = vmatpush1.xpose.msra.mxu0 0.0
        %846 = vmatprep.subr.mxu0 0.0
        %847 = vmatpush1.xpose.msra.mxu0 0.0
        %848 = vmatprep.subr.mxu0 0.0
        %849 = vmatpush1.xpose.msra.mxu0 0.0
        %850 = vmatprep.subr.mxu0 0.0
        %851 = vmatpush1.xpose.msra.mxu0 0.0
        %852 = vmatprep.subr.mxu0 0.0
        %853 = vmatpush1.xpose.msra.mxu0 0.0
        %854 = vmatprep.subr.mxu0 0.0
        %855 = vmatpush1.xpose.msra.mxu0 0.0
        %856 = vmatprep.subr.mxu0 0.0
        %857 = vmatpush1.xpose.msra.mxu0 0.0
        %858 = vmatprep.mubr.f32.mxu0 0.0
        %859 = vmatmul.mubr.f32.gmra.mrb[0].mxu0 %v790
        %v860 = vpop.f32.mrb[0].mxu0
        %v861 = vadd.f32 0.0, %v860
        %v862 = vpop.f32.mrb[0].mxu0
        %863 = vdwg.mxu0
        %v864 = vsel %vm357, %v861, -inf
        %865 = vmax.xlane.f32.xlu0 %v864
        %v866 = vpop.xlane.xlu0 %865
        %v867 = vsub.f32 %v861, %v866
        %v868 = vmul.f32 %v867, 1.442695
        %v869 = vpow.pop %v868
        %v870 = vsel %vm357, %v869, 0.0
        %871 = vadd.xlane.f32.xlu0 %v870
        %v872 = vpop.xlane.xlu0 %871
        %v873 = vrcp.pop %v872
        %v874 = vmul.f32 %v869, %v873
        %875 = vrot.lane.b32.xlu0 %v275, 80
        %v876 = vpop.permute.xlu0 %875
        %v879 = vsel %vm357, %v874, 0
        %881 = vmatprep.subr.mxu0 0.0
        %882 = vmatpush1.msra.mxu0 %v876
        %883 = vmatprep.subr.mxu0 0.0
        %884 = vmatpush1.msra.mxu0 0.0
        %885 = vmatprep.subr.mxu0 0.0
        %886 = vmatpush1.msra.mxu0 0.0
        %887 = vmatprep.subr.mxu0 0.0
        %888 = vmatpush1.msra.mxu0 0.0
        %889 = vmatprep.subr.mxu0 0.0
        %890 = vmatpush1.msra.mxu0 0.0
        %891 = vmatprep.subr.mxu0 0.0
        %892 = vmatpush1.msra.mxu0 0.0
        %893 = vmatprep.subr.mxu0 0.0
        %894 = vmatpush1.msra.mxu0 0.0
        %895 = vmatprep.subr.mxu0 0.0
        %896 = vmatpush1.msra.mxu0 0.0
        %897 = vmatprep.subr.mxu0 0.0
        %898 = vmatpush1.msra.mxu0 0.0
        %899 = vmatprep.subr.mxu0 0.0
        %900 = vmatpush1.msra.mxu0 0.0
        %901 = vmatprep.subr.mxu0 0.0
        %902 = vmatpush1.msra.mxu0 0.0
        %903 = vmatprep.subr.mxu0 0.0
        %904 = vmatpush1.msra.mxu0 0.0
        %905 = vmatprep.subr.mxu0 0.0
        %906 = vmatpush1.msra.mxu0 0.0
        %907 = vmatprep.subr.mxu0 0.0
        %908 = vmatpush1.msra.mxu0 0.0
        %909 = vmatprep.subr.mxu0 0.0
        %910 = vmatpush1.msra.mxu0 0.0
        %911 = vmatprep.subr.mxu0 0.0
        %912 = vmatpush1.msra.mxu0 0.0
        %913 = vmatprep.subr.mxu0 0.0
        %914 = vmatpush1.msra.mxu0 0.0
        %915 = vmatprep.subr.mxu0 0.0
        %916 = vmatpush1.msra.mxu0 0.0
        %917 = vmatprep.subr.mxu0 0.0
        %918 = vmatpush1.msra.mxu0 0.0
        %919 = vmatprep.subr.mxu0 0.0
        %920 = vmatpush1.msra.mxu0 0.0
        %921 = vmatprep.subr.mxu0 0.0
        %922 = vmatpush1.msra.mxu0 0.0
        %923 = vmatprep.subr.mxu0 0.0
        %924 = vmatpush1.msra.mxu0 0.0
        %925 = vmatprep.subr.mxu0 0.0
        %926 = vmatpush1.msra.mxu0 0.0
        %927 = vmatprep.subr.mxu0 0.0
        %928 = vmatpush1.msra.mxu0 0.0
        %929 = vmatprep.subr.mxu0 0.0
        %930 = vmatpush1.msra.mxu0 0.0
        %931 = vmatprep.subr.mxu0 0.0
        %932 = vmatpush1.msra.mxu0 0.0
        %933 = vmatprep.subr.mxu0 0.0
        %934 = vmatpush1.msra.mxu0 0.0
        %935 = vmatprep.subr.mxu0 0.0
        %936 = vmatpush1.msra.mxu0 0.0
        %937 = vmatprep.subr.mxu0 0.0
        %938 = vmatpush1.msra.mxu0 0.0
        %939 = vmatprep.subr.mxu0 0.0
        %940 = vmatpush1.msra.mxu0 0.0
        %941 = vmatprep.subr.mxu0 0.0
        %942 = vmatpush1.msra.mxu0 0.0
        %943 = vmatprep.subr.mxu0 0.0
        %944 = vmatpush1.msra.mxu0 0.0
        %945 = vmatprep.mubr.f32.mxu0 0.0
        %946 = vmatmul.mubr.f32.gmra.mrb[0].mxu0 %v879
        %v947 = vpop.f32.mrb[0].mxu0
        %v948 = vadd.f32 0.0, %v947
        %v949 = vpop.f32.mrb[0].mxu0
        %950 = vdwg.mxu0
        %952 = vrot.lane.b32.xlu0 %v948, 48
        %v953 = vpop.permute.xlu0 %952
        %vm955 = vcmask 523648
        %956 = vst.msk [vmem:[#allocation2] sm:$0xff] %vm955, %v953
        %v957 = vld [vmem:[#allocation2] sm:$0xff]
        %v958 = vld [vmem:[%s2] sm:$0xff]
        %v959 = vld [vmem:[%s2 + $0x8] sm:$0xff]
        %v960 = vld [vmem:[%s2 + $0x10] sm:$0xff]
        %v961 = vld [vmem:[%s2 + $0x18] sm:$0xff]
        %v962 = vld [vmem:[%s2 + $0x20] sm:$0xff]
        %v963 = vld [vmem:[%s2 + $0x28] sm:$0xff]
        %v964 = vld [vmem:[%s2 + $0x30] sm:$0xff]
        %v965 = vld [vmem:[%s2 + $0x38] sm:$0xff]
        %v966 = vld [vmem:[%s3] sm:$0x1]
        %v968 = vlaneseq
        %v969 = vshrl.u32 %v968, 7
        %v970 = vsub.s32 0, %v969
        %v971 = vrot.slane %v966, %v970
        %vm973 = vcmask 523264
        %v975 = vsel %vm973, %v957, 0
        %977 = vmatprep.subr.mxu0 0.0
        %978 = vmatpush1.msra.mxu0 %v958
        %979 = vmatprep.subr.mxu0 0.0
        %980 = vmatpush1.msra.mxu0 %v959
        %981 = vmatprep.subr.mxu0 0.0
        %982 = vmatpush1.msra.mxu0 %v960
        %983 = vmatprep.subr.mxu0 0.0
        %984 = vmatpush1.msra.mxu0 %v961
        %985 = vmatprep.subr.mxu0 0.0
        %986 = vmatpush1.msra.mxu0 %v962
        %987 = vmatprep.subr.mxu0 0.0
        %988 = vmatpush1.msra.mxu0 %v963
        %989 = vmatprep.subr.mxu0 0.0
        %990 = vmatpush1.msra.mxu0 %v964
        %991 = vmatprep.subr.mxu0 0.0
        %992 = vmatpush1.msra.mxu0 %v965
        %993 = vmatprep.subr.mxu0 0.0
        %994 = vmatpush1.msra.mxu0 0.0
        %995 = vmatprep.subr.mxu0 0.0
        %996 = vmatpush1.msra.mxu0 0.0
        %997 = vmatprep.subr.mxu0 0.0
        %998 = vmatpush1.msra.mxu0 0.0
        %999 = vmatprep.subr.mxu0 0.0
        %1000 = vmatpush1.msra.mxu0 0.0
        %1001 = vmatprep.subr.mxu0 0.0
        %1002 = vmatpush1.msra.mxu0 0.0
        %1003 = vmatprep.subr.mxu0 0.0
        %1004 = vmatpush1.msra.mxu0 0.0
        %1005 = vmatprep.subr.mxu0 0.0
        %1006 = vmatpush1.msra.mxu0 0.0
        %1007 = vmatprep.subr.mxu0 0.0
        %1008 = vmatpush1.msra.mxu0 0.0
        %1009 = vmatprep.subr.mxu0 0.0
        %1010 = vmatpush1.msra.mxu0 0.0
        %1011 = vmatprep.subr.mxu0 0.0
        %1012 = vmatpush1.msra.mxu0 0.0
        %1013 = vmatprep.subr.mxu0 0.0
        %1014 = vmatpush1.msra.mxu0 0.0
        %1015 = vmatprep.subr.mxu0 0.0
        %1016 = vmatpush1.msra.mxu0 0.0
        %1017 = vmatprep.subr.mxu0 0.0
        %1018 = vmatpush1.msra.mxu0 0.0
        %1019 = vmatprep.subr.mxu0 0.0
        %1020 = vmatpush1.msra.mxu0 0.0
        %1021 = vmatprep.subr.mxu0 0.0
        %1022 = vmatpush1.msra.mxu0 0.0
        %1023 = vmatprep.subr.mxu0 0.0
        %1024 = vmatpush1.msra.mxu0 0.0
        %1025 = vmatprep.subr.mxu0 0.0
        %1026 = vmatpush1.msra.mxu0 0.0
        %1027 = vmatprep.subr.mxu0 0.0
        %1028 = vmatpush1.msra.mxu0 0.0
        %1029 = vmatprep.subr.mxu0 0.0
        %1030 = vmatpush1.msra.mxu0 0.0
        %1031 = vmatprep.subr.mxu0 0.0
        %1032 = vmatpush1.msra.mxu0 0.0
        %1033 = vmatprep.subr.mxu0 0.0
        %1034 = vmatpush1.msra.mxu0 0.0
        %1035 = vmatprep.subr.mxu0 0.0
        %1036 = vmatpush1.msra.mxu0 0.0
        %1037 = vmatprep.subr.mxu0 0.0
        %1038 = vmatpush1.msra.mxu0 0.0
        %1039 = vmatprep.subr.mxu0 0.0
        %1040 = vmatpush1.msra.mxu0 0.0
        %1041 = vmatprep.mubr.f32.mxu0 0.0
        %1042 = vmatmul.mubr.f32.gmra.mrb[0].mxu0 %v975
        %v1043 = vpop.f32.mrb[0].mxu0
        %v1044 = vadd.f32 %v971, %v1043
        %v1045 = vpop.f32.mrb[0].mxu0
        %1046 = vdwg.mxu0
        %1047 = vst.msk [vmem:[%s188] sm:$0xff] %vm202, %v1044
        %s1048 = sand.u32 %s115, 1
        %s1049 = scalar_lea.sflag [#allocation4], %s1048
        %s1050 = sand.u32 %s115, 1
        %s1051 = smul.addr %s1050, 8
        %s1052 = scalar_lea.vmem [#allocation3], %s1051
        // Predicated region
        $region37: #{tpu_custom_call.1} parent=35 // pred_check
          %p1053 = pneg %p125
        $region38: #{tpu_custom_call.1} parent=35 // pred_check_branch
          %1055 = sbr.rel (%p1053) target = $region40
        $region39: #{tpu_custom_call.1} parent=35 // pred_region
          %s1057 = ssub.s32 128, 128
          %1058 = vsyncadd %s1049, %s1057
          %s1059 = smul.addr %s18, 128
          %s1060 = scalar_lea.hbm %s4, %s1059
          %s1062 = sshll.u32 %s1052, 4
          %s1063 = int_to_ptr.vmem [resolvable:$true] %s1062
          %1065 = dma.vmem_to_hbm [thread:$0]  %s1063, 128, %s1060, %s1049
        $region40: #{tpu_custom_call.1} parent=35 // pred_fallthru
          _
      $region36: #{tpu_custom_call.1} parent=5 // pred_fallthru
        _
      %p1066 = scmp.le.s32.totalorder 2, %s13
      // Predicated region
      $region41: #{tpu_custom_call.1} parent=5 // pred_check
        %p1067 = pneg %p1066
      $region42: #{tpu_custom_call.1} parent=5 // pred_check_branch
        %1069 = sbr.rel (%p1067) target = $region44
      $region43: #{tpu_custom_call.1} parent=5 // pred_region
        %s1070 = ssub.s32 %s13, 2
        // Predicated region
        $region45: #{tpu_custom_call.1} parent=43 // pred_check
          %p1071 = pneg %p131
        $region46: #{tpu_custom_call.1} parent=43 // pred_check_branch
          %1073 = sbr.rel (%p1071) target = $region48
        $region47: #{tpu_custom_call.1} parent=43 // pred_region
          %s1074 = sand.u32 %s116, 1
          %s1075 = scalar_lea.sflag [#allocation4], %s1074
          %s1076 = sand.u32 %s116, 1
          %s1077 = smul.addr %s1076, 8
          %s1078 = scalar_lea.vmem [#allocation3], %s1077
          %1079 = dma.done %s1075, 128
        $region48: #{tpu_custom_call.1} parent=43 // pred_fallthru
          _
      $region44: #{tpu_custom_call.1} parent=5 // pred_fallthru
        _
    $region6: #{tpu_custom_call.1} parent=1 // loop_footer
      %s17 = sadd.s32 1, %s13
    $region7: #{tpu_custom_call.1} parent=1 // loop_footer_branch
      %12 = sbr.rel target = $region3
    $region8: #{tpu_custom_call.1} parent=1 // loop_exit
      _
    %1080 = vsyncpa [#allocation4], 1
    %s1081 = scalar_lea.sflag [#allocation4], 1
    %1082 = vsyncpa %s1081, 1

</llo_original>
